<compile_context>
chip_gen: v7x
topology: tpu7x:2x2x1
jax: 0.10.0
libtpu: 0.0.40
codegen_flags: <defaults>
</compile_context>

<pallas_src>
import functools
import math

import jax
import jax.numpy as jnp
import numpy as np
from jax.experimental import pallas as pl
from jax.experimental.pallas import tpu as pltpu


def dyconv_kernel(attn_ref, wexp_ref, bmix_ref, xpad_ref, o_ref,
                  slab_ref, wacc_ref, wmix_ref, *, K, tile_h, Wo,
                  compute_dtype):
    # attn_ref: (1, 1, E)           per-sample expert attention (f32, from XLA)
    # wexp_ref: (E, Cout, K*K*Cin)  expert weights (compute_dtype), contraction
    #                               order (ky, kx, ci) matching the slab
    # bmix_ref: (1, Cout, 1)        per-sample pre-mixed bias (f32, from XLA)
    # xpad_ref: (1, Hp, Wp, Cin)    zero-padded NHWC input for this sample
    # o_ref:    (1, Cout, tile_h*Wo)  lane-dense NCHW-flat output tile
    # slab_ref: (tile_h*Wo, K*K*Cin)  im2col slab scratch (compute_dtype)
    # wacc_ref: (Cout, K*K*Cin) f32   expert-mix accumulator scratch
    # wmix_ref: (Cout, K*K*Cin) compute_dtype  mixed weight read by the dot
    E = wexp_ref.shape[0]
    Cin = xpad_ref.shape[-1]
    t = pl.program_id(1)

    # ---- build the (tile_h*Wo, K*K*Cin) im2col slab for this row tile -------
    # TODO(synk): if the bundle dump shows per-row copies here, switch to the
    # padded-band slab (K full-width bands) to cut copy count ~K x (v5e vst).
    r0 = pl.multiple_of(t * tile_h, tile_h)
    for ky in range(K):                                        # static unroll
        for kx in range(K):
            tap = xpad_ref[0, pl.ds(r0 + ky, tile_h), kx:kx + Wo, :]
            c0 = (ky * K + kx) * Cin
            slab_ref[:, c0:c0 + Cin] = (
                tap.reshape(tile_h * Wo, Cin).astype(compute_dtype))

    # ---- mix the experts once per sample: f32 accumulate into VMEM scratch --
    @pl.when(t == 0)
    def _():
        a = attn_ref[0]                                        # (1, E) f32
        wacc_ref[...] = a[:, 0:1] * wexp_ref[0].astype(jnp.float32)
        for e in range(1, E):                                  # static unroll
            wacc_ref[...] += a[:, e:e + 1] * wexp_ref[e].astype(jnp.float32)
        wmix_ref[...] = wacc_ref[...].astype(compute_dtype)

    # ---- one deep MXU contraction: (Cout, KKC) . (tile_h*Wo, KKC)^T ----------
    acc = jax.lax.dot_general(
        wmix_ref[...], slab_ref[...],
        dimension_numbers=(((1,), (1,)), ((), ())),
        preferred_element_type=jnp.float32)                    # (Cout, THW)
    o_ref[0] = (acc + bmix_ref[0]).astype(o_ref.dtype)


def _pick_tile_h(Ho, Wo, kkc, itemsize, budget_bytes=8 << 20):
    # Largest Ho-divisor whose slab fits the budget and whose output block is
    # lane-dense (tile_h*Wo % 128 == 0) or the full extent (block-rule escape).
    divisors = [th for th in range(Ho, 0, -1) if Ho % th == 0]
    for th in divisors:
        if th * Wo * kkc * itemsize <= budget_bytes and (
                th == Ho or (th * Wo) % 128 == 0):
            return th
    for th in sorted(divisors):               # budget unreachable: smallest
        if (th * Wo) % 128 == 0:              # lane-dense divisor, else full
            return th
    return Ho


def dyconv_forward(x, params, *, kernel_size=3, stride=1, padding=1,
                   dilation=1, compute_dtype=jnp.bfloat16, tile_h=None):
    assert stride == 1 and dilation == 1, "only stride=1, dilation=1 supported"
    fc1, fc2, weights, bias_e = params
    b, C, H, W = x.shape
    E, Cout, Cin, K, _ = weights.shape
    assert Cin == C and K == kernel_size
    KKC = K * K * Cin

    # ---- attention + bias mix in XLA (tiny, batched) -------------------------
    pooled = jnp.mean(x, axis=(2, 3))                            # (b, Cin)
    h = jnp.maximum(pooled @ fc1, 0.0)
    logits = h @ fc2
    logits = logits - jnp.max(logits, axis=-1, keepdims=True)    # stable softmax
    ex = jnp.exp(logits)
    attn = (ex / jnp.sum(ex, axis=-1, keepdims=True)).astype(jnp.float32)
    attn3 = attn.reshape(b, 1, E)
    bmix = (attn @ bias_e).reshape(b, Cout, 1).astype(jnp.float32)

    # Expert table rearranged once so the per-sample mix directly yields the
    # (Cout, K*K*Cin) matrix whose contraction order (ky, kx, ci) matches the
    # in-kernel slab; cast to compute_dtype so double-buffering it costs no
    # more than a single f32 copy.
    wexp = jnp.transpose(weights, (0, 1, 3, 4, 2)).reshape(E, Cout, KKC)
    wexp = wexp.astype(compute_dtype)

    # NCHW -> NHWC + zero pad + cast (conv consumes it in compute_dtype).
    # TODO(synk): fold the transpose/pad into the kernel (pl.when border) to
    # drop the extra full-activation HBM passes that hurt most on v5e.
    p = padding
    x_pad = jnp.pad(jnp.transpose(x, (0, 2, 3, 1)),
                    ((0, 0), (p, p), (p, p), (0, 0))).astype(compute_dtype)
    Hp, Wp = H + 2 * p, W + 2 * p
    Ho, Wo = Hp - K + 1, Wp - K + 1

    cd_bytes = jnp.dtype(compute_dtype).itemsize
    if tile_h is None:
        tile_h = _pick_tile_h(Ho, Wo, KKC, cd_bytes)
    assert Ho % tile_h == 0, (Ho, tile_h)
    assert tile_h == Ho or (tile_h * Wo) % 128 == 0, (tile_h, Wo)
    n_t = Ho // tile_h

    # Scoped-VMEM limit derived from the actual block sizes, clamped to the
    # chip's capacity (not a hardcoded 32 MiB).
    est = (2 * Hp * Wp * Cin * cd_bytes            # xpad (double-buffered)
           + 2 * E * Cout * KKC * cd_bytes         # expert table
           + 2 * Cout * tile_h * Wo * 4            # output blocks
           + tile_h * Wo * KKC * cd_bytes          # slab scratch
           + Cout * KKC * (4 + cd_bytes)           # wacc + wmix scratch
           + (2 << 20))                            # small blocks + headroom
    try:
        vmem_cap = pltpu.get_tpu_info().vmem_capacity_bytes
    except Exception:
        vmem_cap = 64 * 1024 * 1024                # conservative (v7x per-TC)
    vmem_limit = int(max(32 * 1024 * 1024,
                         min(int(est * 1.25), int(vmem_cap * 0.9))))

    kern = functools.partial(dyconv_kernel, K=K, tile_h=tile_h, Wo=Wo,
                             compute_dtype=compute_dtype)
    out_flat = pl.pallas_call(
        kern,
        out_shape=jax.ShapeDtypeStruct((b, Cout, Ho * Wo), jnp.float32),
        grid=(b, n_t),
        in_specs=[
            pl.BlockSpec((1, 1, E), lambda n, t: (n, 0, 0)),           # attn
            # TODO(synk): single-buffer wexp/bmix via pipeline_mode=pl.Buffered(1)
            # once validated on the target jax build (their block never changes;
            # the pipeliner already skips re-DMA, only the 2nd buffer is waste).
            pl.BlockSpec((E, Cout, KKC), lambda n, t: (0, 0, 0)),      # experts
            pl.BlockSpec((1, Cout, 1), lambda n, t: (n, 0, 0)),        # bias mix
            pl.BlockSpec((1, Hp, Wp, Cin), lambda n, t: (n, 0, 0, 0)), # x padded
        ],
        out_specs=pl.BlockSpec((1, Cout, tile_h * Wo), lambda n, t: (n, 0, t)),
        scratch_shapes=[
            pltpu.VMEM((tile_h * Wo, KKC), compute_dtype),   # im2col slab
            pltpu.VMEM((Cout, KKC), jnp.float32),            # f32 mix accum
            pltpu.VMEM((Cout, KKC), compute_dtype),          # dot-ready wmix
        ],
        compiler_params=pltpu.CompilerParams(
            # Batch axis split across v7x TensorCores; the spatial-tile axis
            # must stay "arbitrary" so the once-per-sample wmix scratch
            # (written at tile==0) is visible to every tile of that sample.
            dimension_semantics=("parallel", "arbitrary"),
            vmem_limit_bytes=vmem_limit),
    )(attn3, wexp, bmix, x_pad)

    # (b, Cout, Ho*Wo) is already NCHW once the spatial axis is unflattened.
    return out_flat.reshape(b, Cout, Ho, Wo)


def reference(x, fc1, fc2, weights, bias_e, padding=1):
    # Pure-JAX f32 replication of the PyTorch forward.
    b = x.shape[0]
    pooled = x.mean(axis=(2, 3))
    h = jnp.maximum(pooled @ fc1, 0.0)
    logits = h @ fc2
    e = jnp.exp(logits)
    a = e / jnp.sum(e, axis=1, keepdims=True)
    Wm = jnp.einsum('be,eoikl->boikl', a, weights)
    bm = a @ bias_e
    outs = []
    for n in range(b):
        o = jax.lax.conv_general_dilated(
            x[n:n + 1], Wm[n], window_strides=(1, 1),
            padding=[(padding, padding), (padding, padding)],
            dimension_numbers=('NCHW', 'OIHW', 'NCHW'))
        outs.append(o[0] + bm[n][:, None, None])
    return jnp.stack(outs)


if __name__ == "__main__":
    b, C, H, W = 2, 8, 16, 16
    E, Cout, K = 4, 8, 3
    padding = 1
    mid = math.ceil(C / 2)

    key = jax.random.PRNGKey(0)
    k1, k2, k3, k4, k5 = jax.random.split(key, 5)
    x = jax.random.normal(k1, (b, C, H, W), jnp.float32)
    fc1 = jax.random.normal(k2, (C, mid), jnp.float32) * (1.0 / math.sqrt(C))
    fc2 = jax.random.normal(k3, (mid, E), jnp.float32) * (1.0 / math.sqrt(mid))
    fan_in = C * K * K
    weights = jax.random.normal(k4, (E, Cout, C, K, K), jnp.float32) * math.sqrt(2.0 / fan_in)
    bias_e = jax.random.normal(k5, (E, Cout), jnp.float32)
    params = (fc1, fc2, weights, bias_e)

    ref = reference(x, fc1, fc2, weights, bias_e, padding=padding)

    # f32 compute, forced multi-tile grid (tile_h=8 -> 2 spatial tiles per
    # sample): exercises the tiling + once-per-sample mix path, tight check.
    out_f32 = dyconv_forward(x, params, kernel_size=K, stride=1,
                             padding=padding, dilation=1,
                             compute_dtype=jnp.float32, tile_h=8)
    out_f32 = jax.block_until_ready(out_f32)
    assert out_f32.shape == (b, Cout, H, W), out_f32.shape
    np.testing.assert_allclose(np.asarray(out_f32), np.asarray(ref),
                               rtol=1e-4, atol=1e-4)

    # Default production path: bf16 slab/dot with f32 accumulation, auto tile.
    # Loose tolerance because the slab/weights are bf16-rounded by design.
    out_bf16 = dyconv_forward(x, params, kernel_size=K, stride=1,
                              padding=padding, dilation=1)
    out_bf16 = jax.block_until_ready(out_bf16)
    assert out_bf16.shape == (b, Cout, H, W), out_bf16.shape
    np.testing.assert_allclose(np.asarray(out_bf16), np.asarray(ref),
                               rtol=1e-1, atol=1e-1)

    print("KERNEL_OK")
</pallas_src>

<mosaic_0001>
module attributes {stable_mosaic.version = 11 : i64} {
  func.func @dyconv_kernel(%arg0: i32, %arg1: i32, %arg2: memref<1x1x4xf32, #tpu.memory_space<vmem>>, %arg3: memref<4x8x72xf32, #tpu.memory_space<vmem>>, %arg4: memref<1x8x1xf32, #tpu.memory_space<vmem>>, %arg5: memref<1x18x18x8xf32, #tpu.memory_space<vmem>>, %arg6: memref<1x8x128xf32, #tpu.memory_space<vmem>>, %arg7: memref<128x72xf32, #tpu.memory_space<vmem>>, %arg8: memref<8x72xf32, #tpu.memory_space<vmem>>, %arg9: memref<8x72xf32, #tpu.memory_space<vmem>>) attributes {dimension_semantics = [#tpu.dimension_semantics<parallel>, #tpu.dimension_semantics<arbitrary>], iteration_bounds = array<i64: 2, 2>, scalar_prefetch = 0 : i64, scratch_operands = 3 : i64, tpu.core_type = #tpu.core_type<tc>, window_params = [{transform_indices = @transform_0, window_bounds = array<i64: 1, 1, 4>}, {pipeline_mode = #tpu.pipeline_mode<synchronous>, transform_indices = @transform_1, window_bounds = array<i64: 4, 8, 72>}, {transform_indices = @transform_2, window_bounds = array<i64: 1, 8, 1>}, {transform_indices = @transform_3, window_bounds = array<i64: 1, 18, 18, 8>}, {transform_indices = @transform_4, window_bounds = array<i64: 1, 8, 128>}]} {
    %c8_i32 = arith.constant 8 : i32
    %0 = arith.muli %arg1, %c8_i32 : i32
    %1 = tpu.assume_multiple %0, 8 : i32
    %c0_i32 = arith.constant 0 : i32
    %2 = arith.addi %1, %c0_i32 : i32
    %c0 = arith.constant 0 : index
    %3 = arith.index_cast %2 : i32 to index
    %c0_0 = arith.constant 0 : index
    %c0_1 = arith.constant 0 : index
    %4 = vector.load %arg5[%c0, %3, %c0_0, %c0_1] : memref<1x18x18x8xf32, #tpu.memory_space<vmem>>, vector<1x8x16x8xf32>
    %5 = vector.shape_cast %4 : vector<1x8x16x8xf32> to vector<8x16x8xf32>
    %6 = vector.shape_cast %5 : vector<8x16x8xf32> to vector<128x8xf32>
    %c0_2 = arith.constant 0 : index
    %c0_3 = arith.constant 0 : index
    %7 = vector.load %arg7[%c0_2, %c0_3] : memref<128x72xf32, #tpu.memory_space<vmem>>, vector<128x8xf32>
    tpu.vector_store %arg7[%c0_2, %c0_3], %6 {strides = array<i32>} : memref<128x72xf32, #tpu.memory_space<vmem>>, vector<128x8xf32>,
    %c0_i32_4 = arith.constant 0 : i32
    %8 = arith.addi %1, %c0_i32_4 : i32
    %c0_5 = arith.constant 0 : index
    %9 = arith.index_cast %8 : i32 to index
    %c1 = arith.constant 1 : index
    %c0_6 = arith.constant 0 : index
    %10 = vector.load %arg5[%c0_5, %9, %c1, %c0_6] : memref<1x18x18x8xf32, #tpu.memory_space<vmem>>, vector<1x8x16x8xf32>
    %11 = vector.shape_cast %10 : vector<1x8x16x8xf32> to vector<8x16x8xf32>
    %12 = vector.shape_cast %11 : vector<8x16x8xf32> to vector<128x8xf32>
    %c0_7 = arith.constant 0 : index
    %c8 = arith.constant 8 : index
    %13 = vector.load %arg7[%c0_7, %c8] : memref<128x72xf32, #tpu.memory_space<vmem>>, vector<128x8xf32>
    tpu.vector_store %arg7[%c0_7, %c8], %12 {strides = array<i32>} : memref<128x72xf32, #tpu.memory_space<vmem>>, vector<128x8xf32>,
    %c0_i32_8 = arith.constant 0 : i32
    %14 = arith.addi %1, %c0_i32_8 : i32
    %c0_9 = arith.constant 0 : index
    %15 = arith.index_cast %14 : i32 to index
    %c2 = arith.constant 2 : index
    %c0_10 = arith.constant 0 : index
    %16 = vector.load %arg5[%c0_9, %15, %c2, %c0_10] : memref<1x18x18x8xf32, #tpu.memory_space<vmem>>, vector<1x8x16x8xf32>
    %17 = vector.shape_cast %16 : vector<1x8x16x8xf32> to vector<8x16x8xf32>
    %18 = vector.shape_cast %17 : vector<8x16x8xf32> to vector<128x8xf32>
    %c0_11 = arith.constant 0 : index
    %c16 = arith.constant 16 : index
    %19 = vector.load %arg7[%c0_11, %c16] : memref<128x72xf32, #tpu.memory_space<vmem>>, vector<128x8xf32>
    tpu.vector_store %arg7[%c0_11, %c16], %18 {strides = array<i32>} : memref<128x72xf32, #tpu.memory_space<vmem>>, vector<128x8xf32>,
    %c1_i32 = arith.constant 1 : i32
    %20 = arith.addi %1, %c1_i32 : i32
    %c0_12 = arith.constant 0 : index
    %21 = arith.index_cast %20 : i32 to index
    %c0_13 = arith.constant 0 : index
    %c0_14 = arith.constant 0 : index
    %22 = vector.load %arg5[%c0_12, %21, %c0_13, %c0_14] : memref<1x18x18x8xf32, #tpu.memory_space<vmem>>, vector<1x8x16x8xf32>
    %23 = vector.shape_cast %22 : vector<1x8x16x8xf32> to vector<8x16x8xf32>
    %24 = vector.shape_cast %23 : vector<8x16x8xf32> to vector<128x8xf32>
    %c0_15 = arith.constant 0 : index
    %c24 = arith.constant 24 : index
    %25 = vector.load %arg7[%c0_15, %c24] : memref<128x72xf32, #tpu.memory_space<vmem>>, vector<128x8xf32>
    tpu.vector_store %arg7[%c0_15, %c24], %24 {strides = array<i32>} : memref<128x72xf32, #tpu.memory_space<vmem>>, vector<128x8xf32>,
    %c1_i32_16 = arith.constant 1 : i32
    %26 = arith.addi %1, %c1_i32_16 : i32
    %c0_17 = arith.constant 0 : index
    %27 = arith.index_cast %26 : i32 to index
    %c1_18 = arith.constant 1 : index
    %c0_19 = arith.constant 0 : index
    %28 = vector.load %arg5[%c0_17, %27, %c1_18, %c0_19] : memref<1x18x18x8xf32, #tpu.memory_space<vmem>>, vector<1x8x16x8xf32>
    %29 = vector.shape_cast %28 : vector<1x8x16x8xf32> to vector<8x16x8xf32>
    %30 = vector.shape_cast %29 : vector<8x16x8xf32> to vector<128x8xf32>
    %c0_20 = arith.constant 0 : index
    %c32 = arith.constant 32 : index
    %31 = vector.load %arg7[%c0_20, %c32] : memref<128x72xf32, #tpu.memory_space<vmem>>, vector<128x8xf32>
    tpu.vector_store %arg7[%c0_20, %c32], %30 {strides = array<i32>} : memref<128x72xf32, #tpu.memory_space<vmem>>, vector<128x8xf32>,
    %c1_i32_21 = arith.constant 1 : i32
    %32 = arith.addi %1, %c1_i32_21 : i32
    %c0_22 = arith.constant 0 : index
    %33 = arith.index_cast %32 : i32 to index
    %c2_23 = arith.constant 2 : index
    %c0_24 = arith.constant 0 : index
    %34 = vector.load %arg5[%c0_22, %33, %c2_23, %c0_24] : memref<1x18x18x8xf32, #tpu.memory_space<vmem>>, vector<1x8x16x8xf32>
    %35 = vector.shape_cast %34 : vector<1x8x16x8xf32> to vector<8x16x8xf32>
    %36 = vector.shape_cast %35 : vector<8x16x8xf32> to vector<128x8xf32>
    %c0_25 = arith.constant 0 : index
    %c40 = arith.constant 40 : index
    %37 = vector.load %arg7[%c0_25, %c40] : memref<128x72xf32, #tpu.memory_space<vmem>>, vector<128x8xf32>
    tpu.vector_store %arg7[%c0_25, %c40], %36 {strides = array<i32>} : memref<128x72xf32, #tpu.memory_space<vmem>>, vector<128x8xf32>,
    %c2_i32 = arith.constant 2 : i32
    %38 = arith.addi %1, %c2_i32 : i32
    %c0_26 = arith.constant 0 : index
    %39 = arith.index_cast %38 : i32 to index
    %c0_27 = arith.constant 0 : index
    %c0_28 = arith.constant 0 : index
    %40 = vector.load %arg5[%c0_26, %39, %c0_27, %c0_28] : memref<1x18x18x8xf32, #tpu.memory_space<vmem>>, vector<1x8x16x8xf32>
    %41 = vector.shape_cast %40 : vector<1x8x16x8xf32> to vector<8x16x8xf32>
    %42 = vector.shape_cast %41 : vector<8x16x8xf32> to vector<128x8xf32>
    %c0_29 = arith.constant 0 : index
    %c48 = arith.constant 48 : index
    %43 = vector.load %arg7[%c0_29, %c48] : memref<128x72xf32, #tpu.memory_space<vmem>>, vector<128x8xf32>
    tpu.vector_store %arg7[%c0_29, %c48], %42 {strides = array<i32>} : memref<128x72xf32, #tpu.memory_space<vmem>>, vector<128x8xf32>,
    %c2_i32_30 = arith.constant 2 : i32
    %44 = arith.addi %1, %c2_i32_30 : i32
    %c0_31 = arith.constant 0 : index
    %45 = arith.index_cast %44 : i32 to index
    %c1_32 = arith.constant 1 : index
    %c0_33 = arith.constant 0 : index
    %46 = vector.load %arg5[%c0_31, %45, %c1_32, %c0_33] : memref<1x18x18x8xf32, #tpu.memory_space<vmem>>, vector<1x8x16x8xf32>
    %47 = vector.shape_cast %46 : vector<1x8x16x8xf32> to vector<8x16x8xf32>
    %48 = vector.shape_cast %47 : vector<8x16x8xf32> to vector<128x8xf32>
    %c0_34 = arith.constant 0 : index
    %c56 = arith.constant 56 : index
    %49 = vector.load %arg7[%c0_34, %c56] : memref<128x72xf32, #tpu.memory_space<vmem>>, vector<128x8xf32>
    tpu.vector_store %arg7[%c0_34, %c56], %48 {strides = array<i32>} : memref<128x72xf32, #tpu.memory_space<vmem>>, vector<128x8xf32>,
    %c2_i32_35 = arith.constant 2 : i32
    %50 = arith.addi %1, %c2_i32_35 : i32
    %c0_36 = arith.constant 0 : index
    %51 = arith.index_cast %50 : i32 to index
    %c2_37 = arith.constant 2 : index
    %c0_38 = arith.constant 0 : index
    %52 = vector.load %arg5[%c0_36, %51, %c2_37, %c0_38] : memref<1x18x18x8xf32, #tpu.memory_space<vmem>>, vector<1x8x16x8xf32>
    %53 = vector.shape_cast %52 : vector<1x8x16x8xf32> to vector<8x16x8xf32>
    %54 = vector.shape_cast %53 : vector<8x16x8xf32> to vector<128x8xf32>
    %c0_39 = arith.constant 0 : index
    %c64 = arith.constant 64 : index
    %55 = vector.load %arg7[%c0_39, %c64] : memref<128x72xf32, #tpu.memory_space<vmem>>, vector<128x8xf32>
    tpu.vector_store %arg7[%c0_39, %c64], %54 {strides = array<i32>} : memref<128x72xf32, #tpu.memory_space<vmem>>, vector<128x8xf32>,
    %c0_i32_40 = arith.constant 0 : i32
    %56 = arith.cmpi eq, %arg1, %c0_i32_40 : i32
    %57 = arith.extui %56 : i1 to i32
    %c0_i32_41 = arith.constant 0 : i32
    %58 = arith.cmpi ne, %57, %c0_i32_41 : i32
    scf.if %58 {
      %c0_52 = arith.constant 0 : index
      %c0_53 = arith.constant 0 : index
      %c0_54 = arith.constant 0 : index
      %69 = vector.load %arg2[%c0_52, %c0_53, %c0_54] : memref<1x1x4xf32, #tpu.memory_space<vmem>>, vector<1x1x4xf32>
      %70 = vector.shape_cast %69 : vector<1x1x4xf32> to vector<1x4xf32>
      %71 = vector.extract_strided_slice %70 {offsets = [0, 0], sizes = [1, 1], strides = [1, 1]} : vector<1x4xf32> to vector<1x1xf32>
      %c0_55 = arith.constant 0 : index
      %c0_56 = arith.constant 0 : index
      %c0_57 = arith.constant 0 : index
      %72 = vector.load %arg3[%c0_55, %c0_56, %c0_57] : memref<4x8x72xf32, #tpu.memory_space<vmem>>, vector<1x8x72xf32>
      %73 = vector.shape_cast %72 : vector<1x8x72xf32> to vector<8x72xf32>
      %74 = vector.broadcast %71 : vector<1x1xf32> to vector<8x72xf32>
      %75 = arith.mulf %74, %73 : vector<8x72xf32>
      %c0_58 = arith.constant 0 : index
      %c0_59 = arith.constant 0 : index
      %76 = vector.load %arg8[%c0_58, %c0_59] : memref<8x72xf32, #tpu.memory_space<vmem>>, vector<8x72xf32>
      tpu.vector_store %arg8[%c0_58, %c0_59], %75 {strides = array<i32>} : memref<8x72xf32, #tpu.memory_space<vmem>>, vector<8x72xf32>,
      %c0_60 = arith.constant 0 : index
      %c0_61 = arith.constant 0 : index
      %77 = vector.load %arg8[%c0_60, %c0_61] : memref<8x72xf32, #tpu.memory_space<vmem>>, vector<8x72xf32>
      %78 = vector.extract_strided_slice %70 {offsets = [0, 1], sizes = [1, 1], strides = [1, 1]} : vector<1x4xf32> to vector<1x1xf32>
      %c1_62 = arith.constant 1 : index
      %c0_63 = arith.constant 0 : index
      %c0_64 = arith.constant 0 : index
      %79 = vector.load %arg3[%c1_62, %c0_63, %c0_64] : memref<4x8x72xf32, #tpu.memory_space<vmem>>, vector<1x8x72xf32>
      %80 = vector.shape_cast %79 : vector<1x8x72xf32> to vector<8x72xf32>
      %81 = vector.broadcast %78 : vector<1x1xf32> to vector<8x72xf32>
      %82 = arith.mulf %81, %80 : vector<8x72xf32>
      %83 = arith.addf %77, %82 : vector<8x72xf32>
      %c0_65 = arith.constant 0 : index
      %c0_66 = arith.constant 0 : index
      %84 = vector.load %arg8[%c0_65, %c0_66] : memref<8x72xf32, #tpu.memory_space<vmem>>, vector<8x72xf32>
      tpu.vector_store %arg8[%c0_65, %c0_66], %83 {strides = array<i32>} : memref<8x72xf32, #tpu.memory_space<vmem>>, vector<8x72xf32>,
      %c0_67 = arith.constant 0 : index
      %c0_68 = arith.constant 0 : index
      %85 = vector.load %arg8[%c0_67, %c0_68] : memref<8x72xf32, #tpu.memory_space<vmem>>, vector<8x72xf32>
      %86 = vector.extract_strided_slice %70 {offsets = [0, 2], sizes = [1, 1], strides = [1, 1]} : vector<1x4xf32> to vector<1x1xf32>
      %c2_69 = arith.constant 2 : index
      %c0_70 = arith.constant 0 : index
      %c0_71 = arith.constant 0 : index
      %87 = vector.load %arg3[%c2_69, %c0_70, %c0_71] : memref<4x8x72xf32, #tpu.memory_space<vmem>>, vector<1x8x72xf32>
      %88 = vector.shape_cast %87 : vector<1x8x72xf32> to vector<8x72xf32>
      %89 = vector.broadcast %86 : vector<1x1xf32> to vector<8x72xf32>
      %90 = arith.mulf %89, %88 : vector<8x72xf32>
      %91 = arith.addf %85, %90 : vector<8x72xf32>
      %c0_72 = arith.constant 0 : index
      %c0_73 = arith.constant 0 : index
      %92 = vector.load %arg8[%c0_72, %c0_73] : memref<8x72xf32, #tpu.memory_space<vmem>>, vector<8x72xf32>
      tpu.vector_store %arg8[%c0_72, %c0_73], %91 {strides = array<i32>} : memref<8x72xf32, #tpu.memory_space<vmem>>, vector<8x72xf32>,
      %c0_74 = arith.constant 0 : index
      %c0_75 = arith.constant 0 : index
      %93 = vector.load %arg8[%c0_74, %c0_75] : memref<8x72xf32, #tpu.memory_space<vmem>>, vector<8x72xf32>
      %94 = vector.extract_strided_slice %70 {offsets = [0, 3], sizes = [1, 1], strides = [1, 1]} : vector<1x4xf32> to vector<1x1xf32>
      %c3 = arith.constant 3 : index
      %c0_76 = arith.constant 0 : index
      %c0_77 = arith.constant 0 : index
      %95 = vector.load %arg3[%c3, %c0_76, %c0_77] : memref<4x8x72xf32, #tpu.memory_space<vmem>>, vector<1x8x72xf32>
      %96 = vector.shape_cast %95 : vector<1x8x72xf32> to vector<8x72xf32>
      %97 = vector.broadcast %94 : vector<1x1xf32> to vector<8x72xf32>
      %98 = arith.mulf %97, %96 : vector<8x72xf32>
      %99 = arith.addf %93, %98 : vector<8x72xf32>
      %c0_78 = arith.constant 0 : index
      %c0_79 = arith.constant 0 : index
      %100 = vector.load %arg8[%c0_78, %c0_79] : memref<8x72xf32, #tpu.memory_space<vmem>>, vector<8x72xf32>
      tpu.vector_store %arg8[%c0_78, %c0_79], %99 {strides = array<i32>} : memref<8x72xf32, #tpu.memory_space<vmem>>, vector<8x72xf32>,
      %c0_80 = arith.constant 0 : index
      %c0_81 = arith.constant 0 : index
      %101 = vector.load %arg8[%c0_80, %c0_81] : memref<8x72xf32, #tpu.memory_space<vmem>>, vector<8x72xf32>
      %c0_82 = arith.constant 0 : index
      %c0_83 = arith.constant 0 : index
      %102 = vector.load %arg9[%c0_82, %c0_83] : memref<8x72xf32, #tpu.memory_space<vmem>>, vector<8x72xf32>
      tpu.vector_store %arg9[%c0_82, %c0_83], %101 {strides = array<i32>} : memref<8x72xf32, #tpu.memory_space<vmem>>, vector<8x72xf32>,
    } else {
    }
    %c0_42 = arith.constant 0 : index
    %c0_43 = arith.constant 0 : index
    %59 = vector.load %arg9[%c0_42, %c0_43] : memref<8x72xf32, #tpu.memory_space<vmem>>, vector<8x72xf32>
    %c0_44 = arith.constant 0 : index
    %c0_45 = arith.constant 0 : index
    %60 = vector.load %arg7[%c0_44, %c0_45] : memref<128x72xf32, #tpu.memory_space<vmem>>, vector<128x72xf32>
    %cst = arith.constant dense<0.000000e+00> : vector<8x128xf32>
    %61 = tpu.matmul %59, %60, %cst {dimension_numbers = #tpu.dot_dimension_numbers<[1], [1], [0], [0], [0, 0, 1, 0], [], []>} : vector<8x72xf32>, vector<128x72xf32>, vector<8x128xf32> -> vector<8x128xf32>
    %c0_46 = arith.constant 0 : index
    %c0_47 = arith.constant 0 : index
    %c0_48 = arith.constant 0 : index
    %62 = vector.load %arg4[%c0_46, %c0_47, %c0_48] : memref<1x8x1xf32, #tpu.memory_space<vmem>>, vector<1x8x1xf32>
    %63 = vector.shape_cast %62 : vector<1x8x1xf32> to vector<8x1xf32>
    %64 = vector.broadcast %63 : vector<8x1xf32> to vector<8x128xf32>
    %65 = arith.addf %61, %64 : vector<8x128xf32>
    %c0_49 = arith.constant 0 : index
    %c0_50 = arith.constant 0 : index
    %c0_51 = arith.constant 0 : index
    %66 = vector.load %arg6[%c0_49, %c0_50, %c0_51] : memref<1x8x128xf32, #tpu.memory_space<vmem>>, vector<1x8x128xf32>
    %67 = vector.shape_cast %66 : vector<1x8x128xf32> to vector<8x128xf32>
    %68 = vector.shape_cast %65 : vector<8x128xf32> to vector<1x8x128xf32>
    tpu.vector_store %arg6[%c0_49, %c0_50, %c0_51], %68 {strides = array<i32>} : memref<1x8x128xf32, #tpu.memory_space<vmem>>, vector<1x8x128xf32>,
    return
  }
  func.func @transform_0(%arg0: i32, %arg1: i32) -> (i32, i32, i32) {
    %c0_i32 = arith.constant 0 : i32
    %c0_i32_0 = arith.constant 0 : i32
    %c0_i32_1 = arith.constant 0 : i32
    return %arg0, %c0_i32, %c0_i32_0 : i32, i32, i32
  }
  func.func @transform_1(%arg0: i32, %arg1: i32) -> (i32, i32, i32) {
    %c0_i32 = arith.constant 0 : i32
    %c0_i32_0 = arith.constant 0 : i32
    %c0_i32_1 = arith.constant 0 : i32
    %c0_i32_2 = arith.constant 0 : i32
    return %c0_i32, %c0_i32_0, %c0_i32_1 : i32, i32, i32
  }
  func.func @transform_2(%arg0: i32, %arg1: i32) -> (i32, i32, i32) {
    %c0_i32 = arith.constant 0 : i32
    %c0_i32_0 = arith.constant 0 : i32
    %c0_i32_1 = arith.constant 0 : i32
    return %arg0, %c0_i32, %c0_i32_0 : i32, i32, i32
  }
  func.func @transform_3(%arg0: i32, %arg1: i32) -> (i32, i32, i32, i32) {
    %c0_i32 = arith.constant 0 : i32
    %c0_i32_0 = arith.constant 0 : i32
    %c0_i32_1 = arith.constant 0 : i32
    %c0_i32_2 = arith.constant 0 : i32
    return %arg0, %c0_i32, %c0_i32_0, %c0_i32_1 : i32, i32, i32, i32
  }
  func.func @transform_4(%arg0: i32, %arg1: i32) -> (i32, i32, i32) {
    %c0_i32 = arith.constant 0 : i32
    %c0_i32_0 = arith.constant 0 : i32
    return %arg0, %c0_i32, %arg1 : i32, i32, i32
  }
}

</mosaic_0001>

<llo_original>
// kernel: tpu_custom_call.1
$region0: #{tpu_custom_call.1}
  #allocation0 [shape = 'u32[]', space=smem, size = 0x4, offset = 0x4, fixed_abs, tag = 'smem constant byte address 0x4 - core index']
  #allocation1 [shape = 'u32[144,128]{1,0:T(1,128)}', space=vmem, size = 0x12000, scoped, tag = 'internal scratch']
  #allocation2 [shape = 'f32[128,72]{1,0:T(8,128)}', space=vmem, size = 0x10000, scoped, tag = 'scratch operand']
  #allocation3 [shape = 'f32[8,72]{1,0:T(8,128)}', space=vmem, size = 0x1000, scoped, tag = 'scratch operand']
  #allocation4 [shape = 'f32[8,72]{1,0:T(8,128)}', space=vmem, size = 0x1000, scoped, tag = 'scratch operand']
  %s0 = inlined_call_operand.vmem [shape: f32[2,1,4], index: 0, kind: input, shape index: {}]
  %s1 = inlined_call_operand.vmem [shape: f32[4,8,72], index: 1, kind: input, shape index: {}]
  %s2 = inlined_call_operand.vmem [shape: f32[2,8,1], index: 2, kind: input, shape index: {}]
  %s3 = inlined_call_operand.vmem [shape: f32[2,18,18,8], index: 3, kind: input, shape index: {}]
  %s4 = inlined_call_operand.hbm [shape: f32[2,8,256], index: 4, kind: output, shape index: {}]
  %s5 = sld [smem:[#allocation0]]
  $region53: #{tpu_custom_call.1} parent=0
    _
  %s7 = ssub.s32 1, %s5
  %s8 = scalar_select 0, %s7, %s5
  $region1: #{tpu_custom_call.1} parent=0
    #allocation5 [shape = 'u8[8192]{0}', space=vmem, size = 0x2000, scoped, tag = 'output window, operand 0']
    #allocation6 [shape = 's32[2]{0}', space=sflag, size = 0x8, scoped, tag = 'scoped memory for tpu_custom_call.1']
    %9 = vsyncpa [#allocation6], 0
    %s10 = scalar_lea.sflag [#allocation6], 1
    %11 = vsyncpa %s10, 0
    loop: start=0, step=1, limit=6
    $region2: #{tpu_custom_call.1} parent=1 // loop_pre_header
      _
    $region3: #{tpu_custom_call.1} parent=1 // loop_header
      %s13 = sphi 0, %s17
      %p14 = scmp.ge.s32.totalorder %s13, 6
      %s20 = sphi 0, %s32
      %s21 = sphi 0, %s28
      %s22 = sphi 0, %s20
      %s23 = sphi 0, %s21
      %s24 = sphi 0, %s22
      %s25 = sphi 0, %s23
      %s35 = sphi 0, %s37
      %s38 = sphi 0, %s35
      %s39 = sphi 0, %s38
      %s55 = sphi 0, %s39
      %s59 = sphi 0, %s59
      %s61 = sphi 0, %s59
      %s62 = sphi 0, %s61
      %s76 = sphi 0, %s62
      %s82 = sphi 0, %s84
      %s85 = sphi 0, %s82
      %s86 = sphi 0, %s85
      %s102 = sphi 0, %s86
      %s108 = sphi 0, %s110
      %s111 = sphi 0, %s108
      %s112 = sphi 0, %s111
      %s128 = sphi 0, %s112
      %s136 = sphi 0, %s138
      %s139 = sphi 0, %s136
      %s140 = sphi 0, %s139
      %s156 = sphi 0, %s140
    $region4: #{tpu_custom_call.1} parent=1 // loop_header_branch
      %16 = sbr.rel (%p14) target = $region8
    $region5: #{tpu_custom_call.1} parent=1 // loop_body
      %s18 = ssub.s32 %s13, 1
      %s19 = ssub.s32 %s13, 2
      %s26 = sadd.s32 1, %s21
      %p27 = scmp.ge.s32.totalorder %s26, 2
      %s28 = scalar_select %p27, 0, %s26
      %s29 = sadd.s32 1, %s20
      %s30 = scalar_select %p27, %s29, %s20
      %p31 = scmp.ge.s32.totalorder %s30, 2
      %s32 = scalar_select %p31, 0, %s30
      %s33 = ssub.s32 %s20, %s32
      %p34 = scmp.eq.s32.totalorder %s33, 0
      %s36 = sadd.s32 %s35, 1
      %s37 = scalar_select %p34, %s35, %s36
      %p40 = pneg %p34
      %p41 = scmp.eq.s32.totalorder %s13, 3
      %p42 = por %p40, %p41
      %p43 = scmp.ne.s32.totalorder %s35, %s38
      %p44 = scmp.eq.s32.totalorder %s13, 0
      %p45 = por %p43, %p44
      %p46 = scmp.ne.s32.totalorder %s35, %s38
      %p47 = scmp.eq.s32.totalorder %s18, 3
      %p48 = por %p46, %p47
      %p49 = scmp.ne.s32.totalorder %s38, %s39
      %p50 = scmp.eq.s32.totalorder %s18, 0
      %p51 = por %p49, %p50
      %p52 = scmp.ne.s32.totalorder %s38, %s39
      %p53 = scmp.eq.s32.totalorder %s19, 3
      %p54 = por %p52, %p53
      %p56 = scmp.ne.s32.totalorder %s39, %s55
      %p57 = scmp.eq.s32.totalorder %s19, 0
      %p58 = por %p56, %p57
      %s60 = sadd.s32 %s59, 1
      %p63 = scmp.eq.s32.totalorder %s13, 3
      %p64 = scmp.ne.s32.totalorder %s59, %s61
      %p65 = scmp.eq.s32.totalorder %s13, 0
      %p66 = por %p64, %p65
      %p67 = scmp.ne.s32.totalorder %s59, %s61
      %p68 = scmp.eq.s32.totalorder %s18, 3
      %p69 = por %p67, %p68
      %p70 = scmp.ne.s32.totalorder %s61, %s62
      %p71 = scmp.eq.s32.totalorder %s18, 0
      %p72 = por %p70, %p71
      %p73 = scmp.ne.s32.totalorder %s61, %s62
      %p74 = scmp.eq.s32.totalorder %s19, 3
      %p75 = por %p73, %p74
      %p77 = scmp.ne.s32.totalorder %s62, %s76
      %p78 = scmp.eq.s32.totalorder %s19, 0
      %p79 = por %p77, %p78
      %s80 = ssub.s32 %s20, %s32
      %p81 = scmp.eq.s32.totalorder %s80, 0
      %s83 = sadd.s32 %s82, 1
      %s84 = scalar_select %p81, %s82, %s83
      %p87 = pneg %p81
      %p88 = scmp.eq.s32.totalorder %s13, 3
      %p89 = por %p87, %p88
      %p90 = scmp.ne.s32.totalorder %s82, %s85
      %p91 = scmp.eq.s32.totalorder %s13, 0
      %p92 = por %p90, %p91
      %p93 = scmp.ne.s32.totalorder %s82, %s85
      %p94 = scmp.eq.s32.totalorder %s18, 3
      %p95 = por %p93, %p94
      %p96 = scmp.ne.s32.totalorder %s85, %s86
      %p97 = scmp.eq.s32.totalorder %s18, 0
      %p98 = por %p96, %p97
      %p99 = scmp.ne.s32.totalorder %s85, %s86
      %p100 = scmp.eq.s32.totalorder %s19, 3
      %p101 = por %p99, %p100
      %p103 = scmp.ne.s32.totalorder %s86, %s102
      %p104 = scmp.eq.s32.totalorder %s19, 0
      %p105 = por %p103, %p104
      %s106 = ssub.s32 %s20, %s32
      %p107 = scmp.eq.s32.totalorder %s106, 0
      %s109 = sadd.s32 %s108, 1
      %s110 = scalar_select %p107, %s108, %s109
      %p113 = pneg %p107
      %p114 = scmp.eq.s32.totalorder %s13, 3
      %p115 = por %p113, %p114
      %p116 = scmp.ne.s32.totalorder %s108, %s111
      %p117 = scmp.eq.s32.totalorder %s13, 0
      %p118 = por %p116, %p117
      %p119 = scmp.ne.s32.totalorder %s108, %s111
      %p120 = scmp.eq.s32.totalorder %s18, 3
      %p121 = por %p119, %p120
      %p122 = scmp.ne.s32.totalorder %s111, %s112
      %p123 = scmp.eq.s32.totalorder %s18, 0
      %p124 = por %p122, %p123
      %p125 = scmp.ne.s32.totalorder %s111, %s112
      %p126 = scmp.eq.s32.totalorder %s19, 3
      %p127 = por %p125, %p126
      %p129 = scmp.ne.s32.totalorder %s112, %s128
      %p130 = scmp.eq.s32.totalorder %s19, 0
      %p131 = por %p129, %p130
      %s132 = ssub.s32 %s20, %s32
      %s133 = ssub.s32 %s21, %s28
      %s134 = sor.u32 %s132, %s133
      %p135 = scmp.eq.s32.totalorder %s134, 0
      %s137 = sadd.s32 %s136, 1
      %s138 = scalar_select %p135, %s136, %s137
      %p141 = pneg %p135
      %p142 = scmp.eq.s32.totalorder %s13, 3
      %p143 = por %p141, %p142
      %p144 = scmp.ne.s32.totalorder %s136, %s139
      %p145 = scmp.eq.s32.totalorder %s13, 0
      %p146 = por %p144, %p145
      %p147 = scmp.ne.s32.totalorder %s136, %s139
      %p148 = scmp.eq.s32.totalorder %s18, 3
      %p149 = por %p147, %p148
      %p150 = scmp.ne.s32.totalorder %s139, %s140
      %p151 = scmp.eq.s32.totalorder %s18, 0
      %p152 = por %p150, %p151
      %p153 = scmp.ne.s32.totalorder %s139, %s140
      %p154 = scmp.eq.s32.totalorder %s19, 3
      %p155 = por %p153, %p154
      %p157 = scmp.ne.s32.totalorder %s140, %s156
      %p158 = scmp.eq.s32.totalorder %s19, 0
      %p159 = por %p157, %p158
      %p160 = scmp.le.s32.totalorder 1, %s13
      %p161 = scmp.lt.s32.totalorder %s13, 5
      %p162 = pnand %p160, %p161
      %p163 = pneg %p162
      // Predicated region
      $region9: #{tpu_custom_call.1} parent=5 // pred_check
        _
      $region10: #{tpu_custom_call.1} parent=5 // pred_check_branch
        %165 = sbr.rel (%p162) target = $region12
      $region11: #{tpu_custom_call.1} parent=5 // pred_region
        %s166 = ssub.s32 %s13, 1
        // Predicated region
        $region13: #{tpu_custom_call.1} parent=11 // pred_check
          %p167 = pneg %p72
        $region14: #{tpu_custom_call.1} parent=11 // pred_check_branch
          %169 = sbr.rel (%p167) target = $region16
        $region15: #{tpu_custom_call.1} parent=11 // pred_region
          _
        $region16: #{tpu_custom_call.1} parent=11 // pred_fallthru
          _
      $region12: #{tpu_custom_call.1} parent=5 // pred_fallthru
        _
      %p170 = scmp.lt.s32.totalorder %s13, 4
      // Predicated region
      $region17: #{tpu_custom_call.1} parent=5 // pred_check
        %p171 = pneg %p170
      $region18: #{tpu_custom_call.1} parent=5 // pred_check_branch
        %173 = sbr.rel (%p171) target = $region20
      $region19: #{tpu_custom_call.1} parent=5 // pred_region
        // Predicated region
        $region21: #{tpu_custom_call.1} parent=19 // pred_check
          %p174 = pneg %p45
        $region22: #{tpu_custom_call.1} parent=19 // pred_check_branch
          %176 = sbr.rel (%p174) target = $region24
        $region23: #{tpu_custom_call.1} parent=19 // pred_region
          %p177 = scmp.lt.s32.totalorder %s20, 1
          %s178 = scalar_select %p177, %s20, 1
          %s179 = scalar_lea.vmem %s0, %s178
        $region24: #{tpu_custom_call.1} parent=19 // pred_fallthru
          _
        // Predicated region
        $region25: #{tpu_custom_call.1} parent=19 // pred_check
          %p180 = pneg %p92
        $region26: #{tpu_custom_call.1} parent=19 // pred_check_branch
          %182 = sbr.rel (%p180) target = $region28
        $region27: #{tpu_custom_call.1} parent=19 // pred_region
          %p183 = scmp.lt.s32.totalorder %s20, 1
          %s184 = scalar_select %p183, %s20, 1
          %s185 = smul.addr %s184, 8
          %s186 = scalar_lea.vmem %s2, %s185
        $region28: #{tpu_custom_call.1} parent=19 // pred_fallthru
          _
        // Predicated region
        $region29: #{tpu_custom_call.1} parent=19 // pred_check
          %p187 = pneg %p118
        $region30: #{tpu_custom_call.1} parent=19 // pred_check_branch
          %189 = sbr.rel (%p187) target = $region32
        $region31: #{tpu_custom_call.1} parent=19 // pred_region
          %p190 = scmp.lt.s32.totalorder %s20, 1
          %s191 = scalar_select %p190, %s20, 1
          %s192 = smul.addr %s191, 54
          %s193 = smul.addr %s192, 8
          %s194 = scalar_lea.vmem %s3, %s193
        $region32: #{tpu_custom_call.1} parent=19 // pred_fallthru
          _
      $region20: #{tpu_custom_call.1} parent=5 // pred_fallthru
        _
      %p195 = scmp.le.s32.totalorder 1, %s13
      %p196 = scmp.lt.s32.totalorder %s13, 5
      %p197 = pnand %p195, %p196
      %p198 = pneg %p197
      // Predicated region
      $region33: #{tpu_custom_call.1} parent=5 // pred_check
        _
      $region34: #{tpu_custom_call.1} parent=5 // pred_check_branch
        %200 = sbr.rel (%p197) target = $region36
      $region35: #{tpu_custom_call.1} parent=5 // pred_region
        %s201 = ssub.s32 %s13, 1
        %p202 = scmp.lt.s32.totalorder %s22, 1
        %s203 = scalar_select %p202, %s22, 1
        %s204 = scalar_lea.vmem %s0, %s203
        %p205 = pneg %p51
        %p206 = pneg %p48
        %p207 = pneg %p72
        %p208 = pneg %p69
        %p209 = scmp.lt.s32.totalorder %s22, 1
        %s210 = scalar_select %p209, %s22, 1
        %s211 = smul.addr %s210, 8
        %s212 = scalar_lea.vmem %s2, %s211
        %p213 = pneg %p98
        %p214 = pneg %p95
        %p215 = scmp.lt.s32.totalorder %s22, 1
        %s216 = scalar_select %p215, %s22, 1
        %s217 = smul.addr %s216, 54
        %s218 = smul.addr %s217, 8
        %s219 = scalar_lea.vmem %s3, %s218
        %p220 = pneg %p124
        %p221 = pneg %p121
        %p222 = pneg %p152
        %p223 = pneg %p149
        %s224 = sand.u32 %s139, 1
        %s225 = scalar_lea.sflag [#allocation6], %s224
        %s226 = sand.u32 %s139, 1
        %s227 = smul.addr %s226, 8
        %s228 = scalar_lea.vmem [#allocation5], %s227
        %p229 = scmp.lt.s32.totalorder %s22, 1
        %s230 = scalar_select %p229, %s22, 1
        %s231 = scalar_lea.vmem %s0, %s230
        %p232 = scmp.lt.s32.totalorder %s22, 1
        %s233 = scalar_select %p232, %s22, 1
        %s234 = smul.addr %s233, 8
        %s235 = scalar_lea.vmem %s2, %s234
        %p236 = scmp.lt.s32.totalorder %s22, 1
        %s237 = scalar_select %p236, %s22, 1
        %s238 = smul.addr %s237, 54
        %s239 = smul.addr %s238, 8
        %s240 = scalar_lea.vmem %s3, %s239
        %s241 = smul.u32 %s23, 8
        %s242 = smul.u32 %s241, 24
        %s243 = scalar_lea.vmem %s240, %s242
        %v244 = vld [vmem:[%s243] sm:$0xff]
        %v245 = vld [vmem:[%s243 + $0x8] sm:$0xff]
        %v246 = vld [vmem:[%s243 + $0x18] sm:$0xff]
        %v247 = vld [vmem:[%s243 + $0x20] sm:$0xff]
        %v248 = vld [vmem:[%s243 + $0x30] sm:$0xff]
        %v249 = vld [vmem:[%s243 + $0x38] sm:$0xff]
        %v250 = vld [vmem:[%s243 + $0x48] sm:$0xff]
        %v251 = vld [vmem:[%s243 + $0x50] sm:$0xff]
        %v252 = vld [vmem:[%s243 + $0x60] sm:$0xff]
        %v253 = vld [vmem:[%s243 + $0x68] sm:$0xff]
        %v254 = vld [vmem:[%s243 + $0x78] sm:$0xff]
        %v255 = vld [vmem:[%s243 + $0x80] sm:$0xff]
        %v256 = vld [vmem:[%s243 + $0x90] sm:$0xff]
        %v257 = vld [vmem:[%s243 + $0x98] sm:$0xff]
        %v258 = vld [vmem:[%s243 + $0xa8] sm:$0xff]
        %v259 = vld [vmem:[%s243 + $0xb0] sm:$0xff]
        %vm260 = vcmask 64512
        %261 = vst.msk [vmem:[#allocation2] sm:$0xff] %vm260, %v244
        %262 = vst.msk [vmem:[#allocation2 + $0x8] sm:$0xff] %vm260, %v245
        %263 = vst.msk [vmem:[#allocation2 + $0x10] sm:$0xff] %vm260, %v246
        %264 = vst.msk [vmem:[#allocation2 + $0x18] sm:$0xff] %vm260, %v247
        %265 = vst.msk [vmem:[#allocation2 + $0x20] sm:$0xff] %vm260, %v248
        %266 = vst.msk [vmem:[#allocation2 + $0x28] sm:$0xff] %vm260, %v249
        %267 = vst.msk [vmem:[#allocation2 + $0x30] sm:$0xff] %vm260, %v250
        %268 = vst.msk [vmem:[#allocation2 + $0x38] sm:$0xff] %vm260, %v251
        %269 = vst.msk [vmem:[#allocation2 + $0x40] sm:$0xff] %vm260, %v252
        %270 = vst.msk [vmem:[#allocation2 + $0x48] sm:$0xff] %vm260, %v253
        %271 = vst.msk [vmem:[#allocation2 + $0x50] sm:$0xff] %vm260, %v254
        %272 = vst.msk [vmem:[#allocation2 + $0x58] sm:$0xff] %vm260, %v255
        %273 = vst.msk [vmem:[#allocation2 + $0x60] sm:$0xff] %vm260, %v256
        %274 = vst.msk [vmem:[#allocation2 + $0x68] sm:$0xff] %vm260, %v257
        %275 = vst.msk [vmem:[#allocation2 + $0x70] sm:$0xff] %vm260, %v258
        %276 = vst.msk [vmem:[#allocation2 + $0x78] sm:$0xff] %vm260, %v259
        %v277 = vld [vmem:[%s243 + $0x1] sm:$0xff]
        %v278 = vld [vmem:[%s243 + $0x9] sm:$0xff]
        %v279 = vld [vmem:[%s243 + $0x19] sm:$0xff]
        %v280 = vld [vmem:[%s243 + $0x21] sm:$0xff]
        %v281 = vld [vmem:[%s243 + $0x31] sm:$0xff]
        %v282 = vld [vmem:[%s243 + $0x39] sm:$0xff]
        %v283 = vld [vmem:[%s243 + $0x49] sm:$0xff]
        %v284 = vld [vmem:[%s243 + $0x51] sm:$0xff]
        %v285 = vld [vmem:[%s243 + $0x61] sm:$0xff]
        %v286 = vld [vmem:[%s243 + $0x69] sm:$0xff]
        %v287 = vld [vmem:[%s243 + $0x79] sm:$0xff]
        %v288 = vld [vmem:[%s243 + $0x81] sm:$0xff]
        %v289 = vld [vmem:[%s243 + $0x91] sm:$0xff]
        %v290 = vld [vmem:[%s243 + $0x99] sm:$0xff]
        %v291 = vld [vmem:[%s243 + $0xa9] sm:$0xff]
        %v292 = vld [vmem:[%s243 + $0xb1] sm:$0xff]
        %309 = vrot.lane.b32.xlu0 %v277, 8
        %v310 = vpop.permute.xlu0 %309
        %311 = vrot.lane.b32.xlu0 %v278, 8
        %v312 = vpop.permute.xlu0 %311
        %313 = vrot.lane.b32.xlu0 %v279, 8
        %v314 = vpop.permute.xlu0 %313
        %315 = vrot.lane.b32.xlu0 %v280, 8
        %v316 = vpop.permute.xlu0 %315
        %317 = vrot.lane.b32.xlu0 %v281, 8
        %v318 = vpop.permute.xlu0 %317
        %319 = vrot.lane.b32.xlu0 %v282, 8
        %v320 = vpop.permute.xlu0 %319
        %321 = vrot.lane.b32.xlu0 %v283, 8
        %v322 = vpop.permute.xlu0 %321
        %323 = vrot.lane.b32.xlu0 %v284, 8
        %v324 = vpop.permute.xlu0 %323
        %325 = vrot.lane.b32.xlu0 %v285, 8
        %v326 = vpop.permute.xlu0 %325
        %327 = vrot.lane.b32.xlu0 %v286, 8
        %v328 = vpop.permute.xlu0 %327
        %329 = vrot.lane.b32.xlu0 %v287, 8
        %v330 = vpop.permute.xlu0 %329
        %331 = vrot.lane.b32.xlu0 %v288, 8
        %v332 = vpop.permute.xlu0 %331
        %333 = vrot.lane.b32.xlu0 %v289, 8
        %v334 = vpop.permute.xlu0 %333
        %335 = vrot.lane.b32.xlu0 %v290, 8
        %v336 = vpop.permute.xlu0 %335
        %337 = vrot.lane.b32.xlu0 %v291, 8
        %v338 = vpop.permute.xlu0 %337
        %339 = vrot.lane.b32.xlu0 %v292, 8
        %v340 = vpop.permute.xlu0 %339
        %vm357 = vcmask 130112
        %358 = vst.msk [vmem:[#allocation2] sm:$0xff] %vm357, %v310
        %359 = vst.msk [vmem:[#allocation2 + $0x8] sm:$0xff] %vm357, %v312
        %360 = vst.msk [vmem:[#allocation2 + $0x10] sm:$0xff] %vm357, %v314
        %361 = vst.msk [vmem:[#allocation2 + $0x18] sm:$0xff] %vm357, %v316
        %362 = vst.msk [vmem:[#allocation2 + $0x20] sm:$0xff] %vm357, %v318
        %363 = vst.msk [vmem:[#allocation2 + $0x28] sm:$0xff] %vm357, %v320
        %364 = vst.msk [vmem:[#allocation2 + $0x30] sm:$0xff] %vm357, %v322
        %365 = vst.msk [vmem:[#allocation2 + $0x38] sm:$0xff] %vm357, %v324
        %366 = vst.msk [vmem:[#allocation2 + $0x40] sm:$0xff] %vm357, %v326
        %367 = vst.msk [vmem:[#allocation2 + $0x48] sm:$0xff] %vm357, %v328
        %368 = vst.msk [vmem:[#allocation2 + $0x50] sm:$0xff] %vm357, %v330
        %369 = vst.msk [vmem:[#allocation2 + $0x58] sm:$0xff] %vm357, %v332
        %370 = vst.msk [vmem:[#allocation2 + $0x60] sm:$0xff] %vm357, %v334
        %371 = vst.msk [vmem:[#allocation2 + $0x68] sm:$0xff] %vm357, %v336
        %372 = vst.msk [vmem:[#allocation2 + $0x70] sm:$0xff] %vm357, %v338
        %373 = vst.msk [vmem:[#allocation2 + $0x78] sm:$0xff] %vm357, %v340
        %v374 = vld [vmem:[%s243 + $0x2] sm:$0xff]
        %v375 = vld [vmem:[%s243 + $0xa] sm:$0xff]
        %v376 = vld [vmem:[%s243 + $0x1a] sm:$0xff]
        %v377 = vld [vmem:[%s243 + $0x22] sm:$0xff]
        %v378 = vld [vmem:[%s243 + $0x32] sm:$0xff]
        %v379 = vld [vmem:[%s243 + $0x3a] sm:$0xff]
        %v380 = vld [vmem:[%s243 + $0x4a] sm:$0xff]
        %v381 = vld [vmem:[%s243 + $0x52] sm:$0xff]
        %v382 = vld [vmem:[%s243 + $0x62] sm:$0xff]
        %v383 = vld [vmem:[%s243 + $0x6a] sm:$0xff]
        %v384 = vld [vmem:[%s243 + $0x7a] sm:$0xff]
        %v385 = vld [vmem:[%s243 + $0x82] sm:$0xff]
        %v386 = vld [vmem:[%s243 + $0x92] sm:$0xff]
        %v387 = vld [vmem:[%s243 + $0x9a] sm:$0xff]
        %v388 = vld [vmem:[%s243 + $0xaa] sm:$0xff]
        %v389 = vld [vmem:[%s243 + $0xb2] sm:$0xff]
        %406 = vrot.lane.b32.xlu0 %v374, 16
        %v407 = vpop.permute.xlu0 %406
        %408 = vrot.lane.b32.xlu0 %v375, 16
        %v409 = vpop.permute.xlu0 %408
        %410 = vrot.lane.b32.xlu0 %v376, 16
        %v411 = vpop.permute.xlu0 %410
        %412 = vrot.lane.b32.xlu0 %v377, 16
        %v413 = vpop.permute.xlu0 %412
        %414 = vrot.lane.b32.xlu0 %v378, 16
        %v415 = vpop.permute.xlu0 %414
        %416 = vrot.lane.b32.xlu0 %v379, 16
        %v417 = vpop.permute.xlu0 %416
        %418 = vrot.lane.b32.xlu0 %v380, 16
        %v419 = vpop.permute.xlu0 %418
        %420 = vrot.lane.b32.xlu0 %v381, 16
        %v421 = vpop.permute.xlu0 %420
        %422 = vrot.lane.b32.xlu0 %v382, 16
        %v423 = vpop.permute.xlu0 %422
        %424 = vrot.lane.b32.xlu0 %v383, 16
        %v425 = vpop.permute.xlu0 %424
        %426 = vrot.lane.b32.xlu0 %v384, 16
        %v427 = vpop.permute.xlu0 %426
        %428 = vrot.lane.b32.xlu0 %v385, 16
        %v429 = vpop.permute.xlu0 %428
        %430 = vrot.lane.b32.xlu0 %v386, 16
        %v431 = vpop.permute.xlu0 %430
        %432 = vrot.lane.b32.xlu0 %v387, 16
        %v433 = vpop.permute.xlu0 %432
        %434 = vrot.lane.b32.xlu0 %v388, 16
        %v435 = vpop.permute.xlu0 %434
        %436 = vrot.lane.b32.xlu0 %v389, 16
        %v437 = vpop.permute.xlu0 %436
        %vm454 = vcmask 195712
        %455 = vst.msk [vmem:[#allocation2] sm:$0xff] %vm454, %v407
        %456 = vst.msk [vmem:[#allocation2 + $0x8] sm:$0xff] %vm454, %v409
        %457 = vst.msk [vmem:[#allocation2 + $0x10] sm:$0xff] %vm454, %v411
        %458 = vst.msk [vmem:[#allocation2 + $0x18] sm:$0xff] %vm454, %v413
        %459 = vst.msk [vmem:[#allocation2 + $0x20] sm:$0xff] %vm454, %v415
        %460 = vst.msk [vmem:[#allocation2 + $0x28] sm:$0xff] %vm454, %v417
        %461 = vst.msk [vmem:[#allocation2 + $0x30] sm:$0xff] %vm454, %v419
        %462 = vst.msk [vmem:[#allocation2 + $0x38] sm:$0xff] %vm454, %v421
        %463 = vst.msk [vmem:[#allocation2 + $0x40] sm:$0xff] %vm454, %v423
        %464 = vst.msk [vmem:[#allocation2 + $0x48] sm:$0xff] %vm454, %v425
        %465 = vst.msk [vmem:[#allocation2 + $0x50] sm:$0xff] %vm454, %v427
        %466 = vst.msk [vmem:[#allocation2 + $0x58] sm:$0xff] %vm454, %v429
        %467 = vst.msk [vmem:[#allocation2 + $0x60] sm:$0xff] %vm454, %v431
        %468 = vst.msk [vmem:[#allocation2 + $0x68] sm:$0xff] %vm454, %v433
        %469 = vst.msk [vmem:[#allocation2 + $0x70] sm:$0xff] %vm454, %v435
        %470 = vst.msk [vmem:[#allocation2 + $0x78] sm:$0xff] %vm454, %v437
        %s471 = sadd.s32 %s241, 1
        %s472 = smul.u32 %s471, 24
        %s473 = scalar_lea.vmem %s240, %s472
        %v474 = vld [vmem:[%s473] sm:$0xff]
        %v475 = vld [vmem:[%s473 + $0x8] sm:$0xff]
        %v476 = vld [vmem:[%s473 + $0x18] sm:$0xff]
        %v477 = vld [vmem:[%s473 + $0x20] sm:$0xff]
        %v478 = vld [vmem:[%s473 + $0x30] sm:$0xff]
        %v479 = vld [vmem:[%s473 + $0x38] sm:$0xff]
        %v480 = vld [vmem:[%s473 + $0x48] sm:$0xff]
        %v481 = vld [vmem:[%s473 + $0x50] sm:$0xff]
        %v482 = vld [vmem:[%s473 + $0x60] sm:$0xff]
        %v483 = vld [vmem:[%s473 + $0x68] sm:$0xff]
        %v484 = vld [vmem:[%s473 + $0x78] sm:$0xff]
        %v485 = vld [vmem:[%s473 + $0x80] sm:$0xff]
        %v486 = vld [vmem:[%s473 + $0x90] sm:$0xff]
        %v487 = vld [vmem:[%s473 + $0x98] sm:$0xff]
        %v488 = vld [vmem:[%s473 + $0xa8] sm:$0xff]
        %v489 = vld [vmem:[%s473 + $0xb0] sm:$0xff]
        %506 = vrot.lane.b32.xlu0 %v474, 24
        %v507 = vpop.permute.xlu0 %506
        %508 = vrot.lane.b32.xlu0 %v475, 24
        %v509 = vpop.permute.xlu0 %508
        %510 = vrot.lane.b32.xlu0 %v476, 24
        %v511 = vpop.permute.xlu0 %510
        %512 = vrot.lane.b32.xlu0 %v477, 24
        %v513 = vpop.permute.xlu0 %512
        %514 = vrot.lane.b32.xlu0 %v478, 24
        %v515 = vpop.permute.xlu0 %514
        %516 = vrot.lane.b32.xlu0 %v479, 24
        %v517 = vpop.permute.xlu0 %516
        %518 = vrot.lane.b32.xlu0 %v480, 24
        %v519 = vpop.permute.xlu0 %518
        %520 = vrot.lane.b32.xlu0 %v481, 24
        %v521 = vpop.permute.xlu0 %520
        %522 = vrot.lane.b32.xlu0 %v482, 24
        %v523 = vpop.permute.xlu0 %522
        %524 = vrot.lane.b32.xlu0 %v483, 24
        %v525 = vpop.permute.xlu0 %524
        %526 = vrot.lane.b32.xlu0 %v484, 24
        %v527 = vpop.permute.xlu0 %526
        %528 = vrot.lane.b32.xlu0 %v485, 24
        %v529 = vpop.permute.xlu0 %528
        %530 = vrot.lane.b32.xlu0 %v486, 24
        %v531 = vpop.permute.xlu0 %530
        %532 = vrot.lane.b32.xlu0 %v487, 24
        %v533 = vpop.permute.xlu0 %532
        %534 = vrot.lane.b32.xlu0 %v488, 24
        %v535 = vpop.permute.xlu0 %534
        %536 = vrot.lane.b32.xlu0 %v489, 24
        %v537 = vpop.permute.xlu0 %536
        %vm554 = vcmask 261312
        %555 = vst.msk [vmem:[#allocation2] sm:$0xff] %vm554, %v507
        %556 = vst.msk [vmem:[#allocation2 + $0x8] sm:$0xff] %vm554, %v509
        %557 = vst.msk [vmem:[#allocation2 + $0x10] sm:$0xff] %vm554, %v511
        %558 = vst.msk [vmem:[#allocation2 + $0x18] sm:$0xff] %vm554, %v513
        %559 = vst.msk [vmem:[#allocation2 + $0x20] sm:$0xff] %vm554, %v515
        %560 = vst.msk [vmem:[#allocation2 + $0x28] sm:$0xff] %vm554, %v517
        %561 = vst.msk [vmem:[#allocation2 + $0x30] sm:$0xff] %vm554, %v519
        %562 = vst.msk [vmem:[#allocation2 + $0x38] sm:$0xff] %vm554, %v521
        %563 = vst.msk [vmem:[#allocation2 + $0x40] sm:$0xff] %vm554, %v523
        %564 = vst.msk [vmem:[#allocation2 + $0x48] sm:$0xff] %vm554, %v525
        %565 = vst.msk [vmem:[#allocation2 + $0x50] sm:$0xff] %vm554, %v527
        %566 = vst.msk [vmem:[#allocation2 + $0x58] sm:$0xff] %vm554, %v529
        %567 = vst.msk [vmem:[#allocation2 + $0x60] sm:$0xff] %vm554, %v531
        %568 = vst.msk [vmem:[#allocation2 + $0x68] sm:$0xff] %vm554, %v533
        %569 = vst.msk [vmem:[#allocation2 + $0x70] sm:$0xff] %vm554, %v535
        %570 = vst.msk [vmem:[#allocation2 + $0x78] sm:$0xff] %vm554, %v537
        %v571 = vld [vmem:[%s473 + $0x1] sm:$0xff]
        %v572 = vld [vmem:[%s473 + $0x9] sm:$0xff]
        %v573 = vld [vmem:[%s473 + $0x19] sm:$0xff]
        %v574 = vld [vmem:[%s473 + $0x21] sm:$0xff]
        %v575 = vld [vmem:[%s473 + $0x31] sm:$0xff]
        %v576 = vld [vmem:[%s473 + $0x39] sm:$0xff]
        %v577 = vld [vmem:[%s473 + $0x49] sm:$0xff]
        %v578 = vld [vmem:[%s473 + $0x51] sm:$0xff]
        %v579 = vld [vmem:[%s473 + $0x61] sm:$0xff]
        %v580 = vld [vmem:[%s473 + $0x69] sm:$0xff]
        %v581 = vld [vmem:[%s473 + $0x79] sm:$0xff]
        %v582 = vld [vmem:[%s473 + $0x81] sm:$0xff]
        %v583 = vld [vmem:[%s473 + $0x91] sm:$0xff]
        %v584 = vld [vmem:[%s473 + $0x99] sm:$0xff]
        %v585 = vld [vmem:[%s473 + $0xa9] sm:$0xff]
        %v586 = vld [vmem:[%s473 + $0xb1] sm:$0xff]
        %603 = vrot.lane.b32.xlu0 %v571, 32
        %v604 = vpop.permute.xlu0 %603
        %605 = vrot.lane.b32.xlu0 %v572, 32
        %v606 = vpop.permute.xlu0 %605
        %607 = vrot.lane.b32.xlu0 %v573, 32
        %v608 = vpop.permute.xlu0 %607
        %609 = vrot.lane.b32.xlu0 %v574, 32
        %v610 = vpop.permute.xlu0 %609
        %611 = vrot.lane.b32.xlu0 %v575, 32
        %v612 = vpop.permute.xlu0 %611
        %613 = vrot.lane.b32.xlu0 %v576, 32
        %v614 = vpop.permute.xlu0 %613
        %615 = vrot.lane.b32.xlu0 %v577, 32
        %v616 = vpop.permute.xlu0 %615
        %617 = vrot.lane.b32.xlu0 %v578, 32
        %v618 = vpop.permute.xlu0 %617
        %619 = vrot.lane.b32.xlu0 %v579, 32
        %v620 = vpop.permute.xlu0 %619
        %621 = vrot.lane.b32.xlu0 %v580, 32
        %v622 = vpop.permute.xlu0 %621
        %623 = vrot.lane.b32.xlu0 %v581, 32
        %v624 = vpop.permute.xlu0 %623
        %625 = vrot.lane.b32.xlu0 %v582, 32
        %v626 = vpop.permute.xlu0 %625
        %627 = vrot.lane.b32.xlu0 %v583, 32
        %v628 = vpop.permute.xlu0 %627
        %629 = vrot.lane.b32.xlu0 %v584, 32
        %v630 = vpop.permute.xlu0 %629
        %631 = vrot.lane.b32.xlu0 %v585, 32
        %v632 = vpop.permute.xlu0 %631
        %633 = vrot.lane.b32.xlu0 %v586, 32
        %v634 = vpop.permute.xlu0 %633
        %vm651 = vcmask 326912
        %652 = vst.msk [vmem:[#allocation2] sm:$0xff] %vm651, %v604
        %653 = vst.msk [vmem:[#allocation2 + $0x8] sm:$0xff] %vm651, %v606
        %654 = vst.msk [vmem:[#allocation2 + $0x10] sm:$0xff] %vm651, %v608
        %655 = vst.msk [vmem:[#allocation2 + $0x18] sm:$0xff] %vm651, %v610
        %656 = vst.msk [vmem:[#allocation2 + $0x20] sm:$0xff] %vm651, %v612
        %657 = vst.msk [vmem:[#allocation2 + $0x28] sm:$0xff] %vm651, %v614
        %658 = vst.msk [vmem:[#allocation2 + $0x30] sm:$0xff] %vm651, %v616
        %659 = vst.msk [vmem:[#allocation2 + $0x38] sm:$0xff] %vm651, %v618
        %660 = vst.msk [vmem:[#allocation2 + $0x40] sm:$0xff] %vm651, %v620
        %661 = vst.msk [vmem:[#allocation2 + $0x48] sm:$0xff] %vm651, %v622
        %662 = vst.msk [vmem:[#allocation2 + $0x50] sm:$0xff] %vm651, %v624
        %663 = vst.msk [vmem:[#allocation2 + $0x58] sm:$0xff] %vm651, %v626
        %664 = vst.msk [vmem:[#allocation2 + $0x60] sm:$0xff] %vm651, %v628
        %665 = vst.msk [vmem:[#allocation2 + $0x68] sm:$0xff] %vm651, %v630
        %666 = vst.msk [vmem:[#allocation2 + $0x70] sm:$0xff] %vm651, %v632
        %667 = vst.msk [vmem:[#allocation2 + $0x78] sm:$0xff] %vm651, %v634
        %v668 = vld [vmem:[%s473 + $0x2] sm:$0xff]
        %v669 = vld [vmem:[%s473 + $0xa] sm:$0xff]
        %v670 = vld [vmem:[%s473 + $0x1a] sm:$0xff]
        %v671 = vld [vmem:[%s473 + $0x22] sm:$0xff]
        %v672 = vld [vmem:[%s473 + $0x32] sm:$0xff]
        %v673 = vld [vmem:[%s473 + $0x3a] sm:$0xff]
        %v674 = vld [vmem:[%s473 + $0x4a] sm:$0xff]
        %v675 = vld [vmem:[%s473 + $0x52] sm:$0xff]
        %v676 = vld [vmem:[%s473 + $0x62] sm:$0xff]
        %v677 = vld [vmem:[%s473 + $0x6a] sm:$0xff]
        %v678 = vld [vmem:[%s473 + $0x7a] sm:$0xff]
        %v679 = vld [vmem:[%s473 + $0x82] sm:$0xff]
        %v680 = vld [vmem:[%s473 + $0x92] sm:$0xff]
        %v681 = vld [vmem:[%s473 + $0x9a] sm:$0xff]
        %v682 = vld [vmem:[%s473 + $0xaa] sm:$0xff]
        %v683 = vld [vmem:[%s473 + $0xb2] sm:$0xff]
        %700 = vrot.lane.b32.xlu0 %v668, 40
        %v701 = vpop.permute.xlu0 %700
        %702 = vrot.lane.b32.xlu0 %v669, 40
        %v703 = vpop.permute.xlu0 %702
        %704 = vrot.lane.b32.xlu0 %v670, 40
        %v705 = vpop.permute.xlu0 %704
        %706 = vrot.lane.b32.xlu0 %v671, 40
        %v707 = vpop.permute.xlu0 %706
        %708 = vrot.lane.b32.xlu0 %v672, 40
        %v709 = vpop.permute.xlu0 %708
        %710 = vrot.lane.b32.xlu0 %v673, 40
        %v711 = vpop.permute.xlu0 %710
        %712 = vrot.lane.b32.xlu0 %v674, 40
        %v713 = vpop.permute.xlu0 %712
        %714 = vrot.lane.b32.xlu0 %v675, 40
        %v715 = vpop.permute.xlu0 %714
        %716 = vrot.lane.b32.xlu0 %v676, 40
        %v717 = vpop.permute.xlu0 %716
        %718 = vrot.lane.b32.xlu0 %v677, 40
        %v719 = vpop.permute.xlu0 %718
        %720 = vrot.lane.b32.xlu0 %v678, 40
        %v721 = vpop.permute.xlu0 %720
        %722 = vrot.lane.b32.xlu0 %v679, 40
        %v723 = vpop.permute.xlu0 %722
        %724 = vrot.lane.b32.xlu0 %v680, 40
        %v725 = vpop.permute.xlu0 %724
        %726 = vrot.lane.b32.xlu0 %v681, 40
        %v727 = vpop.permute.xlu0 %726
        %728 = vrot.lane.b32.xlu0 %v682, 40
        %v729 = vpop.permute.xlu0 %728
        %730 = vrot.lane.b32.xlu0 %v683, 40
        %v731 = vpop.permute.xlu0 %730
        %vm748 = vcmask 392512
        %749 = vst.msk [vmem:[#allocation2] sm:$0xff] %vm748, %v701
        %750 = vst.msk [vmem:[#allocation2 + $0x8] sm:$0xff] %vm748, %v703
        %751 = vst.msk [vmem:[#allocation2 + $0x10] sm:$0xff] %vm748, %v705
        %752 = vst.msk [vmem:[#allocation2 + $0x18] sm:$0xff] %vm748, %v707
        %753 = vst.msk [vmem:[#allocation2 + $0x20] sm:$0xff] %vm748, %v709
        %754 = vst.msk [vmem:[#allocation2 + $0x28] sm:$0xff] %vm748, %v711
        %755 = vst.msk [vmem:[#allocation2 + $0x30] sm:$0xff] %vm748, %v713
        %756 = vst.msk [vmem:[#allocation2 + $0x38] sm:$0xff] %vm748, %v715
        %757 = vst.msk [vmem:[#allocation2 + $0x40] sm:$0xff] %vm748, %v717
        %758 = vst.msk [vmem:[#allocation2 + $0x48] sm:$0xff] %vm748, %v719
        %759 = vst.msk [vmem:[#allocation2 + $0x50] sm:$0xff] %vm748, %v721
        %760 = vst.msk [vmem:[#allocation2 + $0x58] sm:$0xff] %vm748, %v723
        %761 = vst.msk [vmem:[#allocation2 + $0x60] sm:$0xff] %vm748, %v725
        %762 = vst.msk [vmem:[#allocation2 + $0x68] sm:$0xff] %vm748, %v727
        %763 = vst.msk [vmem:[#allocation2 + $0x70] sm:$0xff] %vm748, %v729
        %764 = vst.msk [vmem:[#allocation2 + $0x78] sm:$0xff] %vm748, %v731
        %s765 = sadd.s32 %s241, 2
        %s766 = smul.u32 %s765, 24
        %s767 = scalar_lea.vmem %s240, %s766
        %v768 = vld [vmem:[%s767] sm:$0xff]
        %v769 = vld [vmem:[%s767 + $0x8] sm:$0xff]
        %v770 = vld [vmem:[%s767 + $0x18] sm:$0xff]
        %v771 = vld [vmem:[%s767 + $0x20] sm:$0xff]
        %v772 = vld [vmem:[%s767 + $0x30] sm:$0xff]
        %v773 = vld [vmem:[%s767 + $0x38] sm:$0xff]
        %v774 = vld [vmem:[%s767 + $0x48] sm:$0xff]
        %v775 = vld [vmem:[%s767 + $0x50] sm:$0xff]
        %v776 = vld [vmem:[%s767 + $0x60] sm:$0xff]
        %v777 = vld [vmem:[%s767 + $0x68] sm:$0xff]
        %v778 = vld [vmem:[%s767 + $0x78] sm:$0xff]
        %v779 = vld [vmem:[%s767 + $0x80] sm:$0xff]
        %v780 = vld [vmem:[%s767 + $0x90] sm:$0xff]
        %v781 = vld [vmem:[%s767 + $0x98] sm:$0xff]
        %v782 = vld [vmem:[%s767 + $0xa8] sm:$0xff]
        %v783 = vld [vmem:[%s767 + $0xb0] sm:$0xff]
        %800 = vrot.lane.b32.xlu0 %v768, 48
        %v801 = vpop.permute.xlu0 %800
        %802 = vrot.lane.b32.xlu0 %v769, 48
        %v803 = vpop.permute.xlu0 %802
        %804 = vrot.lane.b32.xlu0 %v770, 48
        %v805 = vpop.permute.xlu0 %804
        %806 = vrot.lane.b32.xlu0 %v771, 48
        %v807 = vpop.permute.xlu0 %806
        %808 = vrot.lane.b32.xlu0 %v772, 48
        %v809 = vpop.permute.xlu0 %808
        %810 = vrot.lane.b32.xlu0 %v773, 48
        %v811 = vpop.permute.xlu0 %810
        %812 = vrot.lane.b32.xlu0 %v774, 48
        %v813 = vpop.permute.xlu0 %812
        %814 = vrot.lane.b32.xlu0 %v775, 48
        %v815 = vpop.permute.xlu0 %814
        %816 = vrot.lane.b32.xlu0 %v776, 48
        %v817 = vpop.permute.xlu0 %816
        %818 = vrot.lane.b32.xlu0 %v777, 48
        %v819 = vpop.permute.xlu0 %818
        %820 = vrot.lane.b32.xlu0 %v778, 48
        %v821 = vpop.permute.xlu0 %820
        %822 = vrot.lane.b32.xlu0 %v779, 48
        %v823 = vpop.permute.xlu0 %822
        %824 = vrot.lane.b32.xlu0 %v780, 48
        %v825 = vpop.permute.xlu0 %824
        %826 = vrot.lane.b32.xlu0 %v781, 48
        %v827 = vpop.permute.xlu0 %826
        %828 = vrot.lane.b32.xlu0 %v782, 48
        %v829 = vpop.permute.xlu0 %828
        %830 = vrot.lane.b32.xlu0 %v783, 48
        %v831 = vpop.permute.xlu0 %830
        %vm848 = vcmask 458112
        %849 = vst.msk [vmem:[#allocation2] sm:$0xff] %vm848, %v801
        %850 = vst.msk [vmem:[#allocation2 + $0x8] sm:$0xff] %vm848, %v803
        %851 = vst.msk [vmem:[#allocation2 + $0x10] sm:$0xff] %vm848, %v805
        %852 = vst.msk [vmem:[#allocation2 + $0x18] sm:$0xff] %vm848, %v807
        %853 = vst.msk [vmem:[#allocation2 + $0x20] sm:$0xff] %vm848, %v809
        %854 = vst.msk [vmem:[#allocation2 + $0x28] sm:$0xff] %vm848, %v811
        %855 = vst.msk [vmem:[#allocation2 + $0x30] sm:$0xff] %vm848, %v813
        %856 = vst.msk [vmem:[#allocation2 + $0x38] sm:$0xff] %vm848, %v815
        %857 = vst.msk [vmem:[#allocation2 + $0x40] sm:$0xff] %vm848, %v817
        %858 = vst.msk [vmem:[#allocation2 + $0x48] sm:$0xff] %vm848, %v819
        %859 = vst.msk [vmem:[#allocation2 + $0x50] sm:$0xff] %vm848, %v821
        %860 = vst.msk [vmem:[#allocation2 + $0x58] sm:$0xff] %vm848, %v823
        %861 = vst.msk [vmem:[#allocation2 + $0x60] sm:$0xff] %vm848, %v825
        %862 = vst.msk [vmem:[#allocation2 + $0x68] sm:$0xff] %vm848, %v827
        %863 = vst.msk [vmem:[#allocation2 + $0x70] sm:$0xff] %vm848, %v829
        %864 = vst.msk [vmem:[#allocation2 + $0x78] sm:$0xff] %vm848, %v831
        %v865 = vld [vmem:[%s767 + $0x1] sm:$0xff]
        %v866 = vld [vmem:[%s767 + $0x9] sm:$0xff]
        %v867 = vld [vmem:[%s767 + $0x19] sm:$0xff]
        %v868 = vld [vmem:[%s767 + $0x21] sm:$0xff]
        %v869 = vld [vmem:[%s767 + $0x31] sm:$0xff]
        %v870 = vld [vmem:[%s767 + $0x39] sm:$0xff]
        %v871 = vld [vmem:[%s767 + $0x49] sm:$0xff]
        %v872 = vld [vmem:[%s767 + $0x51] sm:$0xff]
        %v873 = vld [vmem:[%s767 + $0x61] sm:$0xff]
        %v874 = vld [vmem:[%s767 + $0x69] sm:$0xff]
        %v875 = vld [vmem:[%s767 + $0x79] sm:$0xff]
        %v876 = vld [vmem:[%s767 + $0x81] sm:$0xff]
        %v877 = vld [vmem:[%s767 + $0x91] sm:$0xff]
        %v878 = vld [vmem:[%s767 + $0x99] sm:$0xff]
        %v879 = vld [vmem:[%s767 + $0xa9] sm:$0xff]
        %v880 = vld [vmem:[%s767 + $0xb1] sm:$0xff]
        %897 = vrot.lane.b32.xlu0 %v865, 56
        %v898 = vpop.permute.xlu0 %897
        %899 = vrot.lane.b32.xlu0 %v866, 56
        %v900 = vpop.permute.xlu0 %899
        %901 = vrot.lane.b32.xlu0 %v867, 56
        %v902 = vpop.permute.xlu0 %901
        %903 = vrot.lane.b32.xlu0 %v868, 56
        %v904 = vpop.permute.xlu0 %903
        %905 = vrot.lane.b32.xlu0 %v869, 56
        %v906 = vpop.permute.xlu0 %905
        %907 = vrot.lane.b32.xlu0 %v870, 56
        %v908 = vpop.permute.xlu0 %907
        %909 = vrot.lane.b32.xlu0 %v871, 56
        %v910 = vpop.permute.xlu0 %909
        %911 = vrot.lane.b32.xlu0 %v872, 56
        %v912 = vpop.permute.xlu0 %911
        %913 = vrot.lane.b32.xlu0 %v873, 56
        %v914 = vpop.permute.xlu0 %913
        %915 = vrot.lane.b32.xlu0 %v874, 56
        %v916 = vpop.permute.xlu0 %915
        %917 = vrot.lane.b32.xlu0 %v875, 56
        %v918 = vpop.permute.xlu0 %917
        %919 = vrot.lane.b32.xlu0 %v876, 56
        %v920 = vpop.permute.xlu0 %919
        %921 = vrot.lane.b32.xlu0 %v877, 56
        %v922 = vpop.permute.xlu0 %921
        %923 = vrot.lane.b32.xlu0 %v878, 56
        %v924 = vpop.permute.xlu0 %923
        %925 = vrot.lane.b32.xlu0 %v879, 56
        %v926 = vpop.permute.xlu0 %925
        %927 = vrot.lane.b32.xlu0 %v880, 56
        %v928 = vpop.permute.xlu0 %927
        %vm945 = vcmask 523712
        %946 = vst.msk [vmem:[#allocation2] sm:$0xff] %vm945, %v898
        %947 = vst.msk [vmem:[#allocation2 + $0x8] sm:$0xff] %vm945, %v900
        %948 = vst.msk [vmem:[#allocation2 + $0x10] sm:$0xff] %vm945, %v902
        %949 = vst.msk [vmem:[#allocation2 + $0x18] sm:$0xff] %vm945, %v904
        %950 = vst.msk [vmem:[#allocation2 + $0x20] sm:$0xff] %vm945, %v906
        %951 = vst.msk [vmem:[#allocation2 + $0x28] sm:$0xff] %vm945, %v908
        %952 = vst.msk [vmem:[#allocation2 + $0x30] sm:$0xff] %vm945, %v910
        %953 = vst.msk [vmem:[#allocation2 + $0x38] sm:$0xff] %vm945, %v912
        %954 = vst.msk [vmem:[#allocation2 + $0x40] sm:$0xff] %vm945, %v914
        %955 = vst.msk [vmem:[#allocation2 + $0x48] sm:$0xff] %vm945, %v916
        %956 = vst.msk [vmem:[#allocation2 + $0x50] sm:$0xff] %vm945, %v918
        %957 = vst.msk [vmem:[#allocation2 + $0x58] sm:$0xff] %vm945, %v920
        %958 = vst.msk [vmem:[#allocation2 + $0x60] sm:$0xff] %vm945, %v922
        %959 = vst.msk [vmem:[#allocation2 + $0x68] sm:$0xff] %vm945, %v924
        %960 = vst.msk [vmem:[#allocation2 + $0x70] sm:$0xff] %vm945, %v926
        %961 = vst.msk [vmem:[#allocation2 + $0x78] sm:$0xff] %vm945, %v928
        %v962 = vld [vmem:[%s767 + $0x2] sm:$0xff]
        %v963 = vld [vmem:[%s767 + $0xa] sm:$0xff]
        %v964 = vld [vmem:[%s767 + $0x1a] sm:$0xff]
        %v965 = vld [vmem:[%s767 + $0x22] sm:$0xff]
        %v966 = vld [vmem:[%s767 + $0x32] sm:$0xff]
        %v967 = vld [vmem:[%s767 + $0x3a] sm:$0xff]
        %v968 = vld [vmem:[%s767 + $0x4a] sm:$0xff]
        %v969 = vld [vmem:[%s767 + $0x52] sm:$0xff]
        %v970 = vld [vmem:[%s767 + $0x62] sm:$0xff]
        %v971 = vld [vmem:[%s767 + $0x6a] sm:$0xff]
        %v972 = vld [vmem:[%s767 + $0x7a] sm:$0xff]
        %v973 = vld [vmem:[%s767 + $0x82] sm:$0xff]
        %v974 = vld [vmem:[%s767 + $0x92] sm:$0xff]
        %v975 = vld [vmem:[%s767 + $0x9a] sm:$0xff]
        %v976 = vld [vmem:[%s767 + $0xaa] sm:$0xff]
        %v977 = vld [vmem:[%s767 + $0xb2] sm:$0xff]
        %994 = vrot.lane.b32.xlu0 %v962, 64
        %v995 = vpop.permute.xlu0 %994
        %996 = vrot.lane.b32.xlu0 %v963, 64
        %v997 = vpop.permute.xlu0 %996
        %998 = vrot.lane.b32.xlu0 %v964, 64
        %v999 = vpop.permute.xlu0 %998
        %1000 = vrot.lane.b32.xlu0 %v965, 64
        %v1001 = vpop.permute.xlu0 %1000
        %1002 = vrot.lane.b32.xlu0 %v966, 64
        %v1003 = vpop.permute.xlu0 %1002
        %1004 = vrot.lane.b32.xlu0 %v967, 64
        %v1005 = vpop.permute.xlu0 %1004
        %1006 = vrot.lane.b32.xlu0 %v968, 64
        %v1007 = vpop.permute.xlu0 %1006
        %1008 = vrot.lane.b32.xlu0 %v969, 64
        %v1009 = vpop.permute.xlu0 %1008
        %1010 = vrot.lane.b32.xlu0 %v970, 64
        %v1011 = vpop.permute.xlu0 %1010
        %1012 = vrot.lane.b32.xlu0 %v971, 64
        %v1013 = vpop.permute.xlu0 %1012
        %1014 = vrot.lane.b32.xlu0 %v972, 64
        %v1015 = vpop.permute.xlu0 %1014
        %1016 = vrot.lane.b32.xlu0 %v973, 64
        %v1017 = vpop.permute.xlu0 %1016
        %1018 = vrot.lane.b32.xlu0 %v974, 64
        %v1019 = vpop.permute.xlu0 %1018
        %1020 = vrot.lane.b32.xlu0 %v975, 64
        %v1021 = vpop.permute.xlu0 %1020
        %1022 = vrot.lane.b32.xlu0 %v976, 64
        %v1023 = vpop.permute.xlu0 %1022
        %1024 = vrot.lane.b32.xlu0 %v977, 64
        %v1025 = vpop.permute.xlu0 %1024
        %vm1042 = vcmask 589312
        %1043 = vst.msk [vmem:[#allocation2] sm:$0xff] %vm1042, %v995
        %1044 = vst.msk [vmem:[#allocation2 + $0x8] sm:$0xff] %vm1042, %v997
        %1045 = vst.msk [vmem:[#allocation2 + $0x10] sm:$0xff] %vm1042, %v999
        %1046 = vst.msk [vmem:[#allocation2 + $0x18] sm:$0xff] %vm1042, %v1001
        %1047 = vst.msk [vmem:[#allocation2 + $0x20] sm:$0xff] %vm1042, %v1003
        %1048 = vst.msk [vmem:[#allocation2 + $0x28] sm:$0xff] %vm1042, %v1005
        %1049 = vst.msk [vmem:[#allocation2 + $0x30] sm:$0xff] %vm1042, %v1007
        %1050 = vst.msk [vmem:[#allocation2 + $0x38] sm:$0xff] %vm1042, %v1009
        %1051 = vst.msk [vmem:[#allocation2 + $0x40] sm:$0xff] %vm1042, %v1011
        %1052 = vst.msk [vmem:[#allocation2 + $0x48] sm:$0xff] %vm1042, %v1013
        %1053 = vst.msk [vmem:[#allocation2 + $0x50] sm:$0xff] %vm1042, %v1015
        %1054 = vst.msk [vmem:[#allocation2 + $0x58] sm:$0xff] %vm1042, %v1017
        %1055 = vst.msk [vmem:[#allocation2 + $0x60] sm:$0xff] %vm1042, %v1019
        %1056 = vst.msk [vmem:[#allocation2 + $0x68] sm:$0xff] %vm1042, %v1021
        %1057 = vst.msk [vmem:[#allocation2 + $0x70] sm:$0xff] %vm1042, %v1023
        %1058 = vst.msk [vmem:[#allocation2 + $0x78] sm:$0xff] %vm1042, %v1025
        %p1059 = scmp.eq.s32.totalorder %s23, 0
        // Predicated region
        $region37: #{tpu_custom_call.1} parent=35 // pred_check
          %p1060 = pneg %p1059
        $region38: #{tpu_custom_call.1} parent=35 // pred_check_branch
          %1062 = sbr.rel (%p1060) target = $region40
        $region39: #{tpu_custom_call.1} parent=35 // pred_region
          %v1063 = vld [vmem:[%s231] sm:$0x1]
          %v1064 = vld [vmem:[%s1] sm:$0xff]
          %v1066 = vlaneseq
          %v1067 = vshrl.u32 %v1066, 7
          %v1068 = vsub.s32 0, %v1067
          %v1069 = vrot.slane %v1063, %v1068
          %1070 = vset.pattern.permute.xlu0 0
          %1071 = vperm.xlu0 %1070, %v1069
          %v1072 = vpop.permute.xlu0 %1071
          %v1074 = vmul.f32 %v1072, %v1064
          %vm1075 = vcmask 588800
          %1076 = vst.msk [vmem:[#allocation3] sm:$0xff] %vm1075, %v1074
          %v1077 = vld [vmem:[#allocation3] sm:$0xff]
          %s1078 = scalar_lea.vmem %s1, 8
          %v1079 = vld [vmem:[%s1078] sm:$0xff]
          %1080 = vset.pattern.permute.xlu0 1
          %1081 = vperm.xlu0 %1080, %v1069
          %v1082 = vpop.permute.xlu0 %1081
          %v1084 = vmul.f32 %v1082, %v1079
          %v1085 = vadd.f32 %v1077, %v1084
          %1086 = vst.msk [vmem:[#allocation3] sm:$0xff] %vm1075, %v1085
          %v1087 = vld [vmem:[#allocation3] sm:$0xff]
          %s1088 = scalar_lea.vmem %s1, 16
          %v1089 = vld [vmem:[%s1088] sm:$0xff]
          %1090 = vset.pattern.permute.xlu0 2
          %1091 = vperm.xlu0 %1090, %v1069
          %v1092 = vpop.permute.xlu0 %1091
          %v1094 = vmul.f32 %v1092, %v1089
          %v1095 = vadd.f32 %v1087, %v1094
          %1096 = vst.msk [vmem:[#allocation3] sm:$0xff] %vm1075, %v1095
          %v1097 = vld [vmem:[#allocation3] sm:$0xff]
          %s1098 = scalar_lea.vmem %s1, 24
          %v1099 = vld [vmem:[%s1098] sm:$0xff]
          %1100 = vset.pattern.permute.xlu0 3
          %1101 = vperm.xlu0 %1100, %v1069
          %v1102 = vpop.permute.xlu0 %1101
          %v1104 = vmul.f32 %v1102, %v1099
          %v1105 = vadd.f32 %v1097, %v1104
          %1106 = vst.msk [vmem:[#allocation3] sm:$0xff] %vm1075, %v1105
          %v1107 = vld [vmem:[#allocation3] sm:$0xff]
          %1108 = vst.msk [vmem:[#allocation4] sm:$0xff] %vm1075, %v1107
        $region40: #{tpu_custom_call.1} parent=35 // pred_fallthru
          _
        %v1109 = vld [vmem:[#allocation4] sm:$0xff]
        %v1110 = vld [vmem:[#allocation2] sm:$0xff]
        %v1111 = vld [vmem:[#allocation2 + $0x8] sm:$0xff]
        %v1112 = vld [vmem:[#allocation2 + $0x10] sm:$0xff]
        %v1113 = vld [vmem:[#allocation2 + $0x18] sm:$0xff]
        %v1114 = vld [vmem:[#allocation2 + $0x20] sm:$0xff]
        %v1115 = vld [vmem:[#allocation2 + $0x28] sm:$0xff]
        %v1116 = vld [vmem:[#allocation2 + $0x30] sm:$0xff]
        %v1117 = vld [vmem:[#allocation2 + $0x38] sm:$0xff]
        %v1118 = vld [vmem:[#allocation2 + $0x40] sm:$0xff]
        %v1119 = vld [vmem:[#allocation2 + $0x48] sm:$0xff]
        %v1120 = vld [vmem:[#allocation2 + $0x50] sm:$0xff]
        %v1121 = vld [vmem:[#allocation2 + $0x58] sm:$0xff]
        %v1122 = vld [vmem:[#allocation2 + $0x60] sm:$0xff]
        %v1123 = vld [vmem:[#allocation2 + $0x68] sm:$0xff]
        %v1124 = vld [vmem:[#allocation2 + $0x70] sm:$0xff]
        %v1125 = vld [vmem:[#allocation2 + $0x78] sm:$0xff]
        %v1126 = vld [vmem:[%s235] sm:$0xff]
        %1128 = vset.pattern.permute.xlu0 0
        %1129 = vperm.xlu0 %1128, %v1126
        %v1130 = vpop.permute.xlu0 %1129
        %vm1132 = vcmask 588800
        %v1134 = vsel %vm1132, %v1109, 0
        %v1137 = vsel %vm1132, %v1110, 0
        %v1140 = vsel %vm1132, %v1111, 0
        %v1143 = vsel %vm1132, %v1112, 0
        %v1146 = vsel %vm1132, %v1113, 0
        %v1149 = vsel %vm1132, %v1114, 0
        %v1152 = vsel %vm1132, %v1115, 0
        %v1155 = vsel %vm1132, %v1116, 0
        %v1158 = vsel %vm1132, %v1117, 0
        %v1161 = vsel %vm1132, %v1118, 0
        %v1164 = vsel %vm1132, %v1119, 0
        %v1167 = vsel %vm1132, %v1120, 0
        %v1170 = vsel %vm1132, %v1121, 0
        %v1173 = vsel %vm1132, %v1122, 0
        %v1176 = vsel %vm1132, %v1123, 0
        %v1179 = vsel %vm1132, %v1124, 0
        %v1182 = vsel %vm1132, %v1125, 0
        %1184 = vmatprep.subr.mxu0 0.0
        %1185 = vmatpush1.xpose.msra.mxu0 %v1137
        %1186 = vmatprep.subr.mxu0 0.0
        %1187 = vmatpush1.xpose.msra.mxu0 %v1140
        %1188 = vmatprep.subr.mxu0 0.0
        %1189 = vmatpush1.xpose.msra.mxu0 %v1143
        %1190 = vmatprep.subr.mxu0 0.0
        %1191 = vmatpush1.xpose.msra.mxu0 %v1146
        %1192 = vmatprep.subr.mxu0 0.0
        %1193 = vmatpush1.xpose.msra.mxu0 %v1149
        %1194 = vmatprep.subr.mxu0 0.0
        %1195 = vmatpush1.xpose.msra.mxu0 %v1152
        %1196 = vmatprep.subr.mxu0 0.0
        %1197 = vmatpush1.xpose.msra.mxu0 %v1155
        %1198 = vmatprep.subr.mxu0 0.0
        %1199 = vmatpush1.xpose.msra.mxu0 %v1158
        %1200 = vmatprep.subr.mxu0 0.0
        %1201 = vmatpush1.xpose.msra.mxu0 %v1161
        %1202 = vmatprep.subr.mxu0 0.0
        %1203 = vmatpush1.xpose.msra.mxu0 %v1164
        %1204 = vmatprep.subr.mxu0 0.0
        %1205 = vmatpush1.xpose.msra.mxu0 %v1167
        %1206 = vmatprep.subr.mxu0 0.0
        %1207 = vmatpush1.xpose.msra.mxu0 %v1170
        %1208 = vmatprep.subr.mxu0 0.0
        %1209 = vmatpush1.xpose.msra.mxu0 %v1173
        %1210 = vmatprep.subr.mxu0 0.0
        %1211 = vmatpush1.xpose.msra.mxu0 %v1176
        %1212 = vmatprep.subr.mxu0 0.0
        %1213 = vmatpush1.xpose.msra.mxu0 %v1179
        %1214 = vmatprep.subr.mxu0 0.0
        %1215 = vmatpush1.xpose.msra.mxu0 %v1182
        %1216 = vmatprep.subr.mxu0 0.0
        %1217 = vmatpush1.xpose.msra.mxu0 0.0
        %1218 = vmatprep.subr.mxu0 0.0
        %1219 = vmatpush1.xpose.msra.mxu0 0.0
        %1220 = vmatprep.subr.mxu0 0.0
        %1221 = vmatpush1.xpose.msra.mxu0 0.0
        %1222 = vmatprep.subr.mxu0 0.0
        %1223 = vmatpush1.xpose.msra.mxu0 0.0
        %1224 = vmatprep.subr.mxu0 0.0
        %1225 = vmatpush1.xpose.msra.mxu0 0.0
        %1226 = vmatprep.subr.mxu0 0.0
        %1227 = vmatpush1.xpose.msra.mxu0 0.0
        %1228 = vmatprep.subr.mxu0 0.0
        %1229 = vmatpush1.xpose.msra.mxu0 0.0
        %1230 = vmatprep.subr.mxu0 0.0
        %1231 = vmatpush1.xpose.msra.mxu0 0.0
        %1232 = vmatprep.subr.mxu0 0.0
        %1233 = vmatpush1.xpose.msra.mxu0 0.0
        %1234 = vmatprep.subr.mxu0 0.0
        %1235 = vmatpush1.xpose.msra.mxu0 0.0
        %1236 = vmatprep.subr.mxu0 0.0
        %1237 = vmatpush1.xpose.msra.mxu0 0.0
        %1238 = vmatprep.subr.mxu0 0.0
        %1239 = vmatpush1.xpose.msra.mxu0 0.0
        %1240 = vmatprep.subr.mxu0 0.0
        %1241 = vmatpush1.xpose.msra.mxu0 0.0
        %1242 = vmatprep.subr.mxu0 0.0
        %1243 = vmatpush1.xpose.msra.mxu0 0.0
        %1244 = vmatprep.subr.mxu0 0.0
        %1245 = vmatpush1.xpose.msra.mxu0 0.0
        %1246 = vmatprep.subr.mxu0 0.0
        %1247 = vmatpush1.xpose.msra.mxu0 0.0
        %1248 = vmatprep.mubr.f32.mxu0 0.0
        %1249 = vmatmul.mubr.f32.gmra.mrb[0].mxu0 %v1134
        %v1250 = vpop.f32.mrb[0].mxu0
        %v1251 = vadd.f32 %v1130, %v1250
        %v1252 = vpop.f32.mrb[0].mxu0
        %1253 = vdwg.mxu0
        %1254 = vst [vmem:[%s228] sm:$0xff] %v1251
        %s1255 = sand.u32 %s139, 1
        %s1256 = scalar_lea.sflag [#allocation6], %s1255
        %s1257 = sand.u32 %s139, 1
        %s1258 = smul.addr %s1257, 8
        %s1259 = scalar_lea.vmem [#allocation5], %s1258
        // Predicated region
        $region41: #{tpu_custom_call.1} parent=35 // pred_check
          %p1260 = pneg %p149
        $region42: #{tpu_custom_call.1} parent=35 // pred_check_branch
          %1262 = sbr.rel (%p1260) target = $region44
        $region43: #{tpu_custom_call.1} parent=35 // pred_region
          %s1264 = ssub.s32 128, 128
          %1265 = vsyncadd %s1256, %s1264
          %s1266 = smul.addr %s22, 2
          %s1267 = sadd.s32 %s23, %s1266
          %s1268 = smul.addr %s1267, 128
          %s1269 = scalar_lea.hbm %s4, %s1268
          %s1271 = sshll.u32 %s1259, 4
          %s1272 = int_to_ptr.vmem [resolvable:$true] %s1271
          %1274 = dma.vmem_to_hbm [thread:$0]  %s1272, 128, %s1269, %s1256
        $region44: #{tpu_custom_call.1} parent=35 // pred_fallthru
          _
      $region36: #{tpu_custom_call.1} parent=5 // pred_fallthru
        _
      %p1275 = scmp.le.s32.totalorder 2, %s13
      // Predicated region
      $region45: #{tpu_custom_call.1} parent=5 // pred_check
        %p1276 = pneg %p1275
      $region46: #{tpu_custom_call.1} parent=5 // pred_check_branch
        %1278 = sbr.rel (%p1276) target = $region48
      $region47: #{tpu_custom_call.1} parent=5 // pred_region
        %s1279 = ssub.s32 %s13, 2
        // Predicated region
        $region49: #{tpu_custom_call.1} parent=47 // pred_check
          %p1280 = pneg %p155
        $region50: #{tpu_custom_call.1} parent=47 // pred_check_branch
          %1282 = sbr.rel (%p1280) target = $region52
        $region51: #{tpu_custom_call.1} parent=47 // pred_region
          %s1283 = sand.u32 %s140, 1
          %s1284 = scalar_lea.sflag [#allocation6], %s1283
          %s1285 = sand.u32 %s140, 1
          %s1286 = smul.addr %s1285, 8
          %s1287 = scalar_lea.vmem [#allocation5], %s1286
          %1288 = dma.done %s1284, 128
        $region52: #{tpu_custom_call.1} parent=47 // pred_fallthru
          _
      $region48: #{tpu_custom_call.1} parent=5 // pred_fallthru
        _
    $region6: #{tpu_custom_call.1} parent=1 // loop_footer
      %s17 = sadd.s32 1, %s13
    $region7: #{tpu_custom_call.1} parent=1 // loop_footer_branch
      %12 = sbr.rel target = $region3
    $region8: #{tpu_custom_call.1} parent=1 // loop_exit
      _
    %1289 = vsyncpa [#allocation6], 1
    %s1290 = scalar_lea.sflag [#allocation6], 1
    %1291 = vsyncpa %s1290, 1

</llo_original>
